<compile_context>
chip_gen: v5e
topology: v5e:2x2
jax: 0.10.0
libtpu: 0.0.40
codegen_flags: <defaults>
</compile_context>

<pallas_src>
import functools

import jax
import jax.numpy as jnp
import numpy as np
from jax import lax
from jax.experimental import pallas as pl
from jax.experimental.pallas import tpu as pltpu


# ----------------------------------------------------------------------------- kernel
def attention_nms_kernel(x_ref, pe_ref,
                         wp_ref, bp_ref,
                         wqk_ref, bqk_ref,
                         wc_ref, bc_ref,
                         out_ref, sm_ref,
                         *, num_boxes, groups, dim0, dim_g0, dim_g2):
    nb, G, dg0, dg2 = num_boxes, groups, dim_g0, dim_g2
    f32 = jnp.float32
    bf16 = jnp.bfloat16

    x = x_ref[0, 0]                      # (nb, feat)   bf16 box features (also the values)
    pe = pe_ref[0, 0]                    # (emb, nb*nb) bf16 position embedding, lane-dense

    # --- position branch: one lane-dense (fc, emb) @ (emb, nb*nb) MXU matmul, f32 accum
    pos = jnp.dot(wp_ref[...], pe, preferred_element_type=f32) + bp_ref[...]   # (G, nb*nb)
    pos = jnp.maximum(pos, 0.0)                          # relu
    log_w = jnp.log(jnp.maximum(pos, 1e-6))              # (G, nb*nb) f32
    log_w = log_w.reshape(G, nb, nb)                     # [g, q, k]

    # --- fused q/k projection (1/sqrt(d_k) already folded into the q half of wqk/bqk)
    qk = jnp.dot(x, wqk_ref[...], preferred_element_type=f32) + bqk_ref[...]   # (nb, 2*dim0)
    q = qk[:, :dim0].astype(bf16)
    k = qk[:, dim0:].astype(bf16)

    # --- per-head attention, streamed out head by head (no lists / concatenates)
    for g in range(G):                                   # static unroll, G is small
        qg = q[:, g * dg0:(g + 1) * dg0]                 # (nb, dg0) lane slices
        kg = k[:, g * dg0:(g + 1) * dg0]
        aff = lax.dot_general(qg, kg, (((1,), (1,)), ((), ())),
                              preferred_element_type=f32)            # qg @ kg.T -> (nb, nb)
        w = aff + log_w[g]                               # f32 logits
        m = jnp.max(w, axis=-1, keepdims=True)
        e = jnp.exp(w - m)
        s = jnp.sum(e, axis=-1, keepdims=True)
        p = e * pl.reciprocal(s, approx=True)            # softmax (EUP reciprocal, off VPU)
        sm_ref[0, 0, :, g * nb:(g + 1) * nb] = p         # stream per-head softmax out

        # value aggregation + this head's slice of the grouped 1x1 conv
        out_g = jnp.dot(p.astype(bf16), x, preferred_element_type=f32)          # (nb, feat)
        fin_g = (jnp.dot(out_g.astype(bf16), wc_ref[g], preferred_element_type=f32)
                 + bc_ref[:, g * dg2:(g + 1) * dg2])                             # (nb, dg2)
        out_ref[0, 0, :, g * dg2:(g + 1) * dg2] = fin_g  # stream per-head conv output


# ----------------------------------------------------------------------------- wrapper
def attention_nms_forward(roi_feat, position_embedding, params, *, fc_dim, dim, groups):
    B, nb, nc, feat = roi_feat.shape
    emb = position_embedding.shape[-1]
    assert fc_dim == groups, "fc_dim must equal groups (multi-head count)"
    assert dim[0] == dim[1]
    assert dim[0] % groups == 0 and dim[2] % groups == 0
    dg0 = dim[0] // groups
    dg2 = dim[2] // groups

    wp, bp, wq, bq, wk, bk, wc, bc = params
    bf16 = jnp.bfloat16
    f32 = jnp.float32
    scale = f32(1.0 / np.sqrt(dim[1] // groups))

    # ---- parameter re-layouts (once, by XLA in HBM; bf16 halves weight DMA)
    # fused q/k weight, 1/sqrt(d_k) folded into the q half
    wqk = jnp.concatenate([wq.T * scale, wk.T], axis=1).astype(bf16)          # (feat, 2*dim0)
    bqk = jnp.concatenate([bq * scale, bk])[None, :].astype(f32)              # (1, 2*dim0)
    wp_b = wp.astype(bf16)                                                    # (fc, emb)
    bp2 = bp.reshape(fc_dim, 1).astype(f32)                                   # (fc, 1)
    # grouped 1x1 conv as per-group (feat, dg2) matrices (no zero-padded block-diag)
    wc_g = jnp.transpose(wc.reshape(groups, dg2, feat), (0, 2, 1)).astype(bf16)  # (G, feat, dg2)
    bc2 = bc.reshape(1, dim[2]).astype(f32)                                   # (1, dim2)

    # ---- activation re-layouts (free HBM transposes; bf16 halves the big pe DMA)
    x = jnp.transpose(roi_feat, (0, 2, 1, 3)).astype(bf16)                    # (B, nc, nb, feat)
    pe = jnp.transpose(position_embedding, (0, 1, 4, 2, 3)) \
            .reshape(B, nc, emb, nb * nb).astype(bf16)                        # (B, nc, emb, nb*nb)

    kernel = functools.partial(attention_nms_kernel,
                               num_boxes=nb, groups=groups,
                               dim0=dim[0], dim_g0=dg0, dim_g2=dg2)

    out_shape = (jax.ShapeDtypeStruct((B, nc, nb, dim[2]), f32),
                 jax.ShapeDtypeStruct((B, nc, nb, groups * nb), f32))

    in_specs = [
        pl.BlockSpec((1, 1, nb, feat), lambda b, c: (b, c, 0, 0)),
        pl.BlockSpec((1, 1, emb, nb * nb), lambda b, c: (b, c, 0, 0)),
        pl.BlockSpec((fc_dim, emb), lambda b, c: (0, 0)),
        pl.BlockSpec((fc_dim, 1), lambda b, c: (0, 0)),
        pl.BlockSpec((feat, 2 * dim[0]), lambda b, c: (0, 0)),
        pl.BlockSpec((1, 2 * dim[0]), lambda b, c: (0, 0)),
        pl.BlockSpec((groups, feat, dg2), lambda b, c: (0, 0, 0)),
        pl.BlockSpec((1, dim[2]), lambda b, c: (0, 0)),
    ]
    out_specs = (
        pl.BlockSpec((1, 1, nb, dim[2]), lambda b, c: (b, c, 0, 0)),
        pl.BlockSpec((1, 1, nb, groups * nb), lambda b, c: (b, c, 0, 0)),
    )

    out_r, sm_r = pl.pallas_call(
        kernel,
        out_shape=out_shape,
        grid_spec=pltpu.PrefetchScalarGridSpec(
            num_scalar_prefetch=0,
            grid=(B, nc),                             # two parallel axes -> both v7x cores busy
            in_specs=in_specs,
            out_specs=out_specs,
        ),
        compiler_params=pltpu.CompilerParams(
            dimension_semantics=("parallel", "parallel"),
            vmem_limit_bytes=32 * 1024 * 1024),
    )(x, pe, wp_b, bp2, wqk, bqk, wc_g, bc2)

    # ---- final PyTorch layouts (free HBM reshapes/transposes handled by XLA)
    output = jnp.transpose(out_r, (0, 2, 1, 3))                               # (B, nb, nc, dim2)
    aff_softmax = jnp.transpose(sm_r.reshape(B, nc, nb, groups, nb),
                                (0, 1, 3, 2, 4)).reshape(B, nc * fc_dim, nb, nb)
    return output, aff_softmax


# ----------------------------------------------------------------------------- pure-JAX reference
def attention_nms_reference(roi_feat, position_embedding, params, *, fc_dim, dim, groups):
    B, nb, nc, feat = roi_feat.shape
    dg0 = dim[0] // groups
    dg2 = dim[2] // groups
    wp, bp, wq, bq, wk, bk, wc, bc = params
    wc2 = wc.reshape(groups, dg2, feat)
    bc2 = bc.reshape(groups, dg2)

    x = jnp.transpose(roi_feat, (0, 2, 1, 3))                              # (B,nc,nb,feat)
    aff_w = jax.nn.relu(jnp.einsum('bcqke,fe->bcqkf', position_embedding, wp) + bp)
    log_w = jnp.log(jnp.maximum(jnp.transpose(aff_w, (0, 1, 4, 2, 3)), 1e-6))  # (B,nc,fc,nb,nb)

    q = (jnp.einsum('bcnf,df->bcnd', x, wq) + bq).reshape(B, nc, nb, groups, dg0)
    k = (jnp.einsum('bcnf,df->bcnd', x, wk) + bk).reshape(B, nc, nb, groups, dg0)
    q = jnp.transpose(q, (0, 1, 3, 2, 4))
    k = jnp.transpose(k, (0, 1, 3, 2, 4))
    aff = jnp.einsum('bcgqd,bcgkd->bcgqk', q, k) / np.sqrt(dg0)

    sm = jax.nn.softmax(log_w + aff, axis=-1)                              # (B,nc,G,nb,nb)
    out = jnp.einsum('bcgqk,bckf->bcgqf', sm, x)                           # (B,nc,G,nb,feat)
    fin = jnp.einsum('bcgqf,gof->bcgqo', out, wc2) + bc2[None, None, :, None, :]
    fin = jnp.transpose(fin, (0, 3, 1, 2, 4)).reshape(B, nb, nc, dim[2])   # (B,nb,nc,dim2)
    return fin, sm.reshape(B, nc * fc_dim, nb, nb)


# ----------------------------------------------------------------------------- main
if __name__ == "__main__":
    # small, module-consistent shapes
    B = 2
    num_boxes = 16
    num_classes = 4
    feat_dim = 32
    emb_dim = 16
    fc_dim = 4
    groups = 4          # must equal fc_dim
    dim = (32, 32, 32)  # (query, key, value) dims; dim[0]%groups == 0, dim[2]%groups == 0

    key = jax.random.PRNGKey(0)
    k_roi, k_pe, k_wp, k_wq, k_wk, k_wc = jax.random.split(key, 6)

    roi_feat = jax.random.normal(k_roi, (B, num_boxes, num_classes, feat_dim), jnp.float32)
    pos_emb = jax.random.uniform(k_pe, (B, num_classes, num_boxes, num_boxes, emb_dim),
                                 jnp.float32)

    # deterministic parameter init mirroring the PyTorch __init__
    wp = jax.random.normal(k_wp, (fc_dim, emb_dim), jnp.float32)
    bp = jnp.zeros((fc_dim,), jnp.float32)
    wq = 0.01 * jax.random.normal(k_wq, (dim[0], feat_dim), jnp.float32)
    bq = jnp.zeros((dim[0],), jnp.float32)
    wk = 0.01 * jax.random.normal(k_wk, (dim[1], feat_dim), jnp.float32)
    bk = jnp.zeros((dim[1],), jnp.float32)
    wc = 0.01 * jax.random.normal(k_wc, (dim[2], feat_dim, 1, 1), jnp.float32)  # grouped conv
    bc = jnp.zeros((dim[2],), jnp.float32)
    params = (wp, bp, wq, bq, wk, bk, wc, bc)

    out, aff_sm = attention_nms_forward(roi_feat, pos_emb, params,
                                        fc_dim=fc_dim, dim=dim, groups=groups)
    out = jax.block_until_ready(out)
    aff_sm = jax.block_until_ready(aff_sm)

    # sanity check against a pure-JAX f32 reference of the PyTorch forward
    # (tolerance reflects bf16 MXU operands + EUP approximate-reciprocal softmax
    #  normalization; accumulation and the softmax itself are f32 in the kernel)
    ref_out, ref_sm = attention_nms_reference(roi_feat, pos_emb, params,
                                              fc_dim=fc_dim, dim=dim, groups=groups)
    np.testing.assert_allclose(np.asarray(out), np.asarray(ref_out), rtol=3e-2, atol=3e-2)
    np.testing.assert_allclose(np.asarray(aff_sm), np.asarray(ref_sm), rtol=3e-2, atol=3e-2)

    assert out.shape == (B, num_boxes, num_classes, dim[2])
    assert aff_sm.shape == (B, num_classes * fc_dim, num_boxes, num_boxes)
    print("KERNEL_OK")
</pallas_src>

<mosaic_0001>
module attributes {stable_mosaic.version = 11 : i64} {
  func.func @attention_nms_kernel(%arg0: i32, %arg1: i32, %arg2: memref<1x1x16x32xbf16, #tpu.memory_space<vmem>>, %arg3: memref<1x1x16x256xbf16, #tpu.memory_space<vmem>>, %arg4: memref<4x16xbf16, #tpu.memory_space<vmem>>, %arg5: memref<4x1xf32, #tpu.memory_space<vmem>>, %arg6: memref<32x64xbf16, #tpu.memory_space<vmem>>, %arg7: memref<1x64xf32, #tpu.memory_space<vmem>>, %arg8: memref<4x32x8xbf16, #tpu.memory_space<vmem>>, %arg9: memref<1x32xf32, #tpu.memory_space<vmem>>, %arg10: memref<1x1x16x32xf32, #tpu.memory_space<vmem>>, %arg11: memref<1x1x16x64xf32, #tpu.memory_space<vmem>>) attributes {dimension_semantics = [#tpu.dimension_semantics<parallel>, #tpu.dimension_semantics<parallel>], iteration_bounds = array<i64: 2, 4>, scalar_prefetch = 0 : i64, scratch_operands = 0 : i64, tpu.core_type = #tpu.core_type<tc>, window_params = [{transform_indices = @transform_0, window_bounds = array<i64: 1, 1, 16, 32>}, {transform_indices = @transform_1, window_bounds = array<i64: 1, 1, 16, 256>}, {pipeline_mode = #tpu.pipeline_mode<synchronous>, transform_indices = @transform_2, window_bounds = array<i64: 4, 16>}, {pipeline_mode = #tpu.pipeline_mode<synchronous>, transform_indices = @transform_3, window_bounds = array<i64: 4, 1>}, {pipeline_mode = #tpu.pipeline_mode<synchronous>, transform_indices = @transform_4, window_bounds = array<i64: 32, 64>}, {pipeline_mode = #tpu.pipeline_mode<synchronous>, transform_indices = @transform_5, window_bounds = array<i64: 1, 64>}, {pipeline_mode = #tpu.pipeline_mode<synchronous>, transform_indices = @transform_6, window_bounds = array<i64: 4, 32, 8>}, {pipeline_mode = #tpu.pipeline_mode<synchronous>, transform_indices = @transform_7, window_bounds = array<i64: 1, 32>}, {transform_indices = @transform_8, window_bounds = array<i64: 1, 1, 16, 32>}, {transform_indices = @transform_9, window_bounds = array<i64: 1, 1, 16, 64>}]} {
    %c0 = arith.constant 0 : index
    %c0_0 = arith.constant 0 : index
    %c0_1 = arith.constant 0 : index
    %c0_2 = arith.constant 0 : index
    %0 = vector.load %arg2[%c0, %c0_0, %c0_1, %c0_2] : memref<1x1x16x32xbf16, #tpu.memory_space<vmem>>, vector<1x1x16x32xbf16>
    %1 = vector.shape_cast %0 : vector<1x1x16x32xbf16> to vector<16x32xbf16>
    %c0_3 = arith.constant 0 : index
    %c0_4 = arith.constant 0 : index
    %c0_5 = arith.constant 0 : index
    %c0_6 = arith.constant 0 : index
    %2 = vector.load %arg3[%c0_3, %c0_4, %c0_5, %c0_6] : memref<1x1x16x256xbf16, #tpu.memory_space<vmem>>, vector<1x1x16x256xbf16>
    %3 = vector.shape_cast %2 : vector<1x1x16x256xbf16> to vector<16x256xbf16>
    %c0_7 = arith.constant 0 : index
    %c0_8 = arith.constant 0 : index
    %4 = vector.load %arg4[%c0_7, %c0_8] : memref<4x16xbf16, #tpu.memory_space<vmem>>, vector<4x16xbf16>
    %cst = arith.constant dense<0.000000e+00> : vector<4x256xf32>
    %5 = tpu.matmul %4, %3, %cst {dimension_numbers = #tpu.dot_dimension_numbers<[1], [0], [0], [1], [0, 0, 1, 1], [], []>} : vector<4x16xbf16>, vector<16x256xbf16>, vector<4x256xf32> -> vector<4x256xf32>
    %c0_9 = arith.constant 0 : index
    %c0_10 = arith.constant 0 : index
    %6 = vector.load %arg5[%c0_9, %c0_10] : memref<4x1xf32, #tpu.memory_space<vmem>>, vector<4x1xf32>
    %7 = vector.broadcast %6 : vector<4x1xf32> to vector<4x256xf32>
    %8 = arith.addf %5, %7 : vector<4x256xf32>
    %cst_11 = arith.constant 0.000000e+00 : f32
    %9 = vector.broadcast %cst_11 : f32 to vector<4x256xf32>
    %10 = arith.maximumf %8, %9 : vector<4x256xf32>
    %cst_12 = arith.constant 9.99999997E-7 : f32
    %11 = vector.broadcast %cst_12 : f32 to vector<4x256xf32>
    %12 = arith.maximumf %10, %11 : vector<4x256xf32>
    %13 = math.log %12 : vector<4x256xf32>
    %14 = vector.shape_cast %13 : vector<4x256xf32> to vector<4x16x16xf32>
    %c0_13 = arith.constant 0 : index
    %c0_14 = arith.constant 0 : index
    %15 = vector.load %arg6[%c0_13, %c0_14] : memref<32x64xbf16, #tpu.memory_space<vmem>>, vector<32x64xbf16>
    %cst_15 = arith.constant dense<0.000000e+00> : vector<16x64xf32>
    %16 = tpu.matmul %1, %15, %cst_15 {dimension_numbers = #tpu.dot_dimension_numbers<[1], [0], [0], [1], [0, 0, 1, 1], [], []>} : vector<16x32xbf16>, vector<32x64xbf16>, vector<16x64xf32> -> vector<16x64xf32>
    %c0_16 = arith.constant 0 : index
    %c0_17 = arith.constant 0 : index
    %17 = vector.load %arg7[%c0_16, %c0_17] : memref<1x64xf32, #tpu.memory_space<vmem>>, vector<1x64xf32>
    %18 = vector.broadcast %17 : vector<1x64xf32> to vector<16x64xf32>
    %19 = arith.addf %16, %18 : vector<16x64xf32>
    %20 = vector.extract_strided_slice %19 {offsets = [0, 0], sizes = [16, 32], strides = [1, 1]} : vector<16x64xf32> to vector<16x32xf32>
    %21 = arith.truncf %20 : vector<16x32xf32> to vector<16x32xbf16>
    %22 = vector.extract_strided_slice %19 {offsets = [0, 32], sizes = [16, 32], strides = [1, 1]} : vector<16x64xf32> to vector<16x32xf32>
    %23 = arith.truncf %22 : vector<16x32xf32> to vector<16x32xbf16>
    %24 = vector.extract_strided_slice %21 {offsets = [0, 0], sizes = [16, 8], strides = [1, 1]} : vector<16x32xbf16> to vector<16x8xbf16>
    %25 = vector.extract_strided_slice %23 {offsets = [0, 0], sizes = [16, 8], strides = [1, 1]} : vector<16x32xbf16> to vector<16x8xbf16>
    %cst_18 = arith.constant dense<0.000000e+00> : vector<16x16xf32>
    %26 = tpu.matmul %24, %25, %cst_18 {dimension_numbers = #tpu.dot_dimension_numbers<[1], [1], [0], [0], [0, 0, 1, 0], [], []>} : vector<16x8xbf16>, vector<16x8xbf16>, vector<16x16xf32> -> vector<16x16xf32>
    %27 = vector.extract_strided_slice %14 {offsets = [0, 0, 0], sizes = [1, 16, 16], strides = [1, 1, 1]} : vector<4x16x16xf32> to vector<1x16x16xf32>
    %28 = vector.shape_cast %27 : vector<1x16x16xf32> to vector<16x16xf32>
    %29 = arith.addf %26, %28 : vector<16x16xf32>
    %cst_19 = arith.constant dense<0xFF800000> : vector<16xf32>
    %30 = vector.multi_reduction <maximumf>, %29, %cst_19 [1] : vector<16x16xf32> to vector<16xf32>
    %31 = vector.shape_cast %30 : vector<16xf32> to vector<16x1xf32>
    %32 = vector.broadcast %31 : vector<16x1xf32> to vector<16x16xf32>
    %33 = arith.subf %29, %32 : vector<16x16xf32>
    %34 = math.exp %33 : vector<16x16xf32>
    %cst_20 = arith.constant dense<0.000000e+00> : vector<16xf32>
    %35 = vector.multi_reduction <add>, %34, %cst_20 [1] : vector<16x16xf32> to vector<16xf32>
    %36 = vector.shape_cast %35 : vector<16xf32> to vector<16x1xf32>
    %37 = tpu.reciprocal %36 {approx = true} : vector<16x1xf32> -> vector<16x1xf32>
    %38 = vector.broadcast %37 : vector<16x1xf32> to vector<16x16xf32>
    %39 = arith.mulf %34, %38 : vector<16x16xf32>
    %c0_21 = arith.constant 0 : index
    %c0_22 = arith.constant 0 : index
    %c0_23 = arith.constant 0 : index
    %c0_24 = arith.constant 0 : index
    %40 = vector.load %arg11[%c0_21, %c0_22, %c0_23, %c0_24] : memref<1x1x16x64xf32, #tpu.memory_space<vmem>>, vector<1x1x16x16xf32>
    %41 = vector.shape_cast %40 : vector<1x1x16x16xf32> to vector<16x16xf32>
    %42 = vector.shape_cast %39 : vector<16x16xf32> to vector<1x1x16x16xf32>
    tpu.vector_store %arg11[%c0_21, %c0_22, %c0_23, %c0_24], %42 {strides = array<i32>} : memref<1x1x16x64xf32, #tpu.memory_space<vmem>>, vector<1x1x16x16xf32>,
    %43 = arith.truncf %39 : vector<16x16xf32> to vector<16x16xbf16>
    %cst_25 = arith.constant dense<0.000000e+00> : vector<16x32xf32>
    %44 = tpu.matmul %43, %1, %cst_25 {dimension_numbers = #tpu.dot_dimension_numbers<[1], [0], [0], [1], [0, 0, 1, 1], [], []>} : vector<16x16xbf16>, vector<16x32xbf16>, vector<16x32xf32> -> vector<16x32xf32>
    %45 = arith.truncf %44 : vector<16x32xf32> to vector<16x32xbf16>
    %c0_26 = arith.constant 0 : index
    %c0_27 = arith.constant 0 : index
    %c0_28 = arith.constant 0 : index
    %46 = vector.load %arg8[%c0_26, %c0_27, %c0_28] : memref<4x32x8xbf16, #tpu.memory_space<vmem>>, vector<1x32x8xbf16>
    %47 = vector.shape_cast %46 : vector<1x32x8xbf16> to vector<32x8xbf16>
    %cst_29 = arith.constant dense<0.000000e+00> : vector<16x8xf32>
    %48 = tpu.matmul %45, %47, %cst_29 {dimension_numbers = #tpu.dot_dimension_numbers<[1], [0], [0], [1], [0, 0, 1, 1], [], []>} : vector<16x32xbf16>, vector<32x8xbf16>, vector<16x8xf32> -> vector<16x8xf32>
    %c0_30 = arith.constant 0 : index
    %c0_31 = arith.constant 0 : index
    %49 = vector.load %arg9[%c0_30, %c0_31] : memref<1x32xf32, #tpu.memory_space<vmem>>, vector<1x8xf32>
    %50 = vector.broadcast %49 : vector<1x8xf32> to vector<16x8xf32>
    %51 = arith.addf %48, %50 : vector<16x8xf32>
    %c0_32 = arith.constant 0 : index
    %c0_33 = arith.constant 0 : index
    %c0_34 = arith.constant 0 : index
    %c0_35 = arith.constant 0 : index
    %52 = vector.load %arg10[%c0_32, %c0_33, %c0_34, %c0_35] : memref<1x1x16x32xf32, #tpu.memory_space<vmem>>, vector<1x1x16x8xf32>
    %53 = vector.shape_cast %52 : vector<1x1x16x8xf32> to vector<16x8xf32>
    %54 = vector.shape_cast %51 : vector<16x8xf32> to vector<1x1x16x8xf32>
    tpu.vector_store %arg10[%c0_32, %c0_33, %c0_34, %c0_35], %54 {strides = array<i32>} : memref<1x1x16x32xf32, #tpu.memory_space<vmem>>, vector<1x1x16x8xf32>,
    %55 = vector.extract_strided_slice %21 {offsets = [0, 8], sizes = [16, 8], strides = [1, 1]} : vector<16x32xbf16> to vector<16x8xbf16>
    %56 = vector.extract_strided_slice %23 {offsets = [0, 8], sizes = [16, 8], strides = [1, 1]} : vector<16x32xbf16> to vector<16x8xbf16>
    %cst_36 = arith.constant dense<0.000000e+00> : vector<16x16xf32>
    %57 = tpu.matmul %55, %56, %cst_36 {dimension_numbers = #tpu.dot_dimension_numbers<[1], [1], [0], [0], [0, 0, 1, 0], [], []>} : vector<16x8xbf16>, vector<16x8xbf16>, vector<16x16xf32> -> vector<16x16xf32>
    %58 = vector.extract_strided_slice %14 {offsets = [1, 0, 0], sizes = [1, 16, 16], strides = [1, 1, 1]} : vector<4x16x16xf32> to vector<1x16x16xf32>
    %59 = vector.shape_cast %58 : vector<1x16x16xf32> to vector<16x16xf32>
    %60 = arith.addf %57, %59 : vector<16x16xf32>
    %cst_37 = arith.constant dense<0xFF800000> : vector<16xf32>
    %61 = vector.multi_reduction <maximumf>, %60, %cst_37 [1] : vector<16x16xf32> to vector<16xf32>
    %62 = vector.shape_cast %61 : vector<16xf32> to vector<16x1xf32>
    %63 = vector.broadcast %62 : vector<16x1xf32> to vector<16x16xf32>
    %64 = arith.subf %60, %63 : vector<16x16xf32>
    %65 = math.exp %64 : vector<16x16xf32>
    %cst_38 = arith.constant dense<0.000000e+00> : vector<16xf32>
    %66 = vector.multi_reduction <add>, %65, %cst_38 [1] : vector<16x16xf32> to vector<16xf32>
    %67 = vector.shape_cast %66 : vector<16xf32> to vector<16x1xf32>
    %68 = tpu.reciprocal %67 {approx = true} : vector<16x1xf32> -> vector<16x1xf32>
    %69 = vector.broadcast %68 : vector<16x1xf32> to vector<16x16xf32>
    %70 = arith.mulf %65, %69 : vector<16x16xf32>
    %c0_39 = arith.constant 0 : index
    %c0_40 = arith.constant 0 : index
    %c0_41 = arith.constant 0 : index
    %c16 = arith.constant 16 : index
    %71 = vector.load %arg11[%c0_39, %c0_40, %c0_41, %c16] : memref<1x1x16x64xf32, #tpu.memory_space<vmem>>, vector<1x1x16x16xf32>
    %72 = vector.shape_cast %71 : vector<1x1x16x16xf32> to vector<16x16xf32>
    %73 = vector.shape_cast %70 : vector<16x16xf32> to vector<1x1x16x16xf32>
    tpu.vector_store %arg11[%c0_39, %c0_40, %c0_41, %c16], %73 {strides = array<i32>} : memref<1x1x16x64xf32, #tpu.memory_space<vmem>>, vector<1x1x16x16xf32>,
    %74 = arith.truncf %70 : vector<16x16xf32> to vector<16x16xbf16>
    %cst_42 = arith.constant dense<0.000000e+00> : vector<16x32xf32>
    %75 = tpu.matmul %74, %1, %cst_42 {dimension_numbers = #tpu.dot_dimension_numbers<[1], [0], [0], [1], [0, 0, 1, 1], [], []>} : vector<16x16xbf16>, vector<16x32xbf16>, vector<16x32xf32> -> vector<16x32xf32>
    %76 = arith.truncf %75 : vector<16x32xf32> to vector<16x32xbf16>
    %c1 = arith.constant 1 : index
    %c0_43 = arith.constant 0 : index
    %c0_44 = arith.constant 0 : index
    %77 = vector.load %arg8[%c1, %c0_43, %c0_44] : memref<4x32x8xbf16, #tpu.memory_space<vmem>>, vector<1x32x8xbf16>
    %78 = vector.shape_cast %77 : vector<1x32x8xbf16> to vector<32x8xbf16>
    %cst_45 = arith.constant dense<0.000000e+00> : vector<16x8xf32>
    %79 = tpu.matmul %76, %78, %cst_45 {dimension_numbers = #tpu.dot_dimension_numbers<[1], [0], [0], [1], [0, 0, 1, 1], [], []>} : vector<16x32xbf16>, vector<32x8xbf16>, vector<16x8xf32> -> vector<16x8xf32>
    %c0_46 = arith.constant 0 : index
    %c8 = arith.constant 8 : index
    %80 = vector.load %arg9[%c0_46, %c8] : memref<1x32xf32, #tpu.memory_space<vmem>>, vector<1x8xf32>
    %81 = vector.broadcast %80 : vector<1x8xf32> to vector<16x8xf32>
    %82 = arith.addf %79, %81 : vector<16x8xf32>
    %c0_47 = arith.constant 0 : index
    %c0_48 = arith.constant 0 : index
    %c0_49 = arith.constant 0 : index
    %c8_50 = arith.constant 8 : index
    %83 = vector.load %arg10[%c0_47, %c0_48, %c0_49, %c8_50] : memref<1x1x16x32xf32, #tpu.memory_space<vmem>>, vector<1x1x16x8xf32>
    %84 = vector.shape_cast %83 : vector<1x1x16x8xf32> to vector<16x8xf32>
    %85 = vector.shape_cast %82 : vector<16x8xf32> to vector<1x1x16x8xf32>
    tpu.vector_store %arg10[%c0_47, %c0_48, %c0_49, %c8_50], %85 {strides = array<i32>} : memref<1x1x16x32xf32, #tpu.memory_space<vmem>>, vector<1x1x16x8xf32>,
    %86 = vector.extract_strided_slice %21 {offsets = [0, 16], sizes = [16, 8], strides = [1, 1]} : vector<16x32xbf16> to vector<16x8xbf16>
    %87 = vector.extract_strided_slice %23 {offsets = [0, 16], sizes = [16, 8], strides = [1, 1]} : vector<16x32xbf16> to vector<16x8xbf16>
    %cst_51 = arith.constant dense<0.000000e+00> : vector<16x16xf32>
    %88 = tpu.matmul %86, %87, %cst_51 {dimension_numbers = #tpu.dot_dimension_numbers<[1], [1], [0], [0], [0, 0, 1, 0], [], []>} : vector<16x8xbf16>, vector<16x8xbf16>, vector<16x16xf32> -> vector<16x16xf32>
    %89 = vector.extract_strided_slice %14 {offsets = [2, 0, 0], sizes = [1, 16, 16], strides = [1, 1, 1]} : vector<4x16x16xf32> to vector<1x16x16xf32>
    %90 = vector.shape_cast %89 : vector<1x16x16xf32> to vector<16x16xf32>
    %91 = arith.addf %88, %90 : vector<16x16xf32>
    %cst_52 = arith.constant dense<0xFF800000> : vector<16xf32>
    %92 = vector.multi_reduction <maximumf>, %91, %cst_52 [1] : vector<16x16xf32> to vector<16xf32>
    %93 = vector.shape_cast %92 : vector<16xf32> to vector<16x1xf32>
    %94 = vector.broadcast %93 : vector<16x1xf32> to vector<16x16xf32>
    %95 = arith.subf %91, %94 : vector<16x16xf32>
    %96 = math.exp %95 : vector<16x16xf32>
    %cst_53 = arith.constant dense<0.000000e+00> : vector<16xf32>
    %97 = vector.multi_reduction <add>, %96, %cst_53 [1] : vector<16x16xf32> to vector<16xf32>
    %98 = vector.shape_cast %97 : vector<16xf32> to vector<16x1xf32>
    %99 = tpu.reciprocal %98 {approx = true} : vector<16x1xf32> -> vector<16x1xf32>
    %100 = vector.broadcast %99 : vector<16x1xf32> to vector<16x16xf32>
    %101 = arith.mulf %96, %100 : vector<16x16xf32>
    %c0_54 = arith.constant 0 : index
    %c0_55 = arith.constant 0 : index
    %c0_56 = arith.constant 0 : index
    %c32 = arith.constant 32 : index
    %102 = vector.load %arg11[%c0_54, %c0_55, %c0_56, %c32] : memref<1x1x16x64xf32, #tpu.memory_space<vmem>>, vector<1x1x16x16xf32>
    %103 = vector.shape_cast %102 : vector<1x1x16x16xf32> to vector<16x16xf32>
    %104 = vector.shape_cast %101 : vector<16x16xf32> to vector<1x1x16x16xf32>
    tpu.vector_store %arg11[%c0_54, %c0_55, %c0_56, %c32], %104 {strides = array<i32>} : memref<1x1x16x64xf32, #tpu.memory_space<vmem>>, vector<1x1x16x16xf32>,
    %105 = arith.truncf %101 : vector<16x16xf32> to vector<16x16xbf16>
    %cst_57 = arith.constant dense<0.000000e+00> : vector<16x32xf32>
    %106 = tpu.matmul %105, %1, %cst_57 {dimension_numbers = #tpu.dot_dimension_numbers<[1], [0], [0], [1], [0, 0, 1, 1], [], []>} : vector<16x16xbf16>, vector<16x32xbf16>, vector<16x32xf32> -> vector<16x32xf32>
    %107 = arith.truncf %106 : vector<16x32xf32> to vector<16x32xbf16>
    %c2 = arith.constant 2 : index
    %c0_58 = arith.constant 0 : index
    %c0_59 = arith.constant 0 : index
    %108 = vector.load %arg8[%c2, %c0_58, %c0_59] : memref<4x32x8xbf16, #tpu.memory_space<vmem>>, vector<1x32x8xbf16>
    %109 = vector.shape_cast %108 : vector<1x32x8xbf16> to vector<32x8xbf16>
    %cst_60 = arith.constant dense<0.000000e+00> : vector<16x8xf32>
    %110 = tpu.matmul %107, %109, %cst_60 {dimension_numbers = #tpu.dot_dimension_numbers<[1], [0], [0], [1], [0, 0, 1, 1], [], []>} : vector<16x32xbf16>, vector<32x8xbf16>, vector<16x8xf32> -> vector<16x8xf32>
    %c0_61 = arith.constant 0 : index
    %c16_62 = arith.constant 16 : index
    %111 = vector.load %arg9[%c0_61, %c16_62] : memref<1x32xf32, #tpu.memory_space<vmem>>, vector<1x8xf32>
    %112 = vector.broadcast %111 : vector<1x8xf32> to vector<16x8xf32>
    %113 = arith.addf %110, %112 : vector<16x8xf32>
    %c0_63 = arith.constant 0 : index
    %c0_64 = arith.constant 0 : index
    %c0_65 = arith.constant 0 : index
    %c16_66 = arith.constant 16 : index
    %114 = vector.load %arg10[%c0_63, %c0_64, %c0_65, %c16_66] : memref<1x1x16x32xf32, #tpu.memory_space<vmem>>, vector<1x1x16x8xf32>
    %115 = vector.shape_cast %114 : vector<1x1x16x8xf32> to vector<16x8xf32>
    %116 = vector.shape_cast %113 : vector<16x8xf32> to vector<1x1x16x8xf32>
    tpu.vector_store %arg10[%c0_63, %c0_64, %c0_65, %c16_66], %116 {strides = array<i32>} : memref<1x1x16x32xf32, #tpu.memory_space<vmem>>, vector<1x1x16x8xf32>,
    %117 = vector.extract_strided_slice %21 {offsets = [0, 24], sizes = [16, 8], strides = [1, 1]} : vector<16x32xbf16> to vector<16x8xbf16>
    %118 = vector.extract_strided_slice %23 {offsets = [0, 24], sizes = [16, 8], strides = [1, 1]} : vector<16x32xbf16> to vector<16x8xbf16>
    %cst_67 = arith.constant dense<0.000000e+00> : vector<16x16xf32>
    %119 = tpu.matmul %117, %118, %cst_67 {dimension_numbers = #tpu.dot_dimension_numbers<[1], [1], [0], [0], [0, 0, 1, 0], [], []>} : vector<16x8xbf16>, vector<16x8xbf16>, vector<16x16xf32> -> vector<16x16xf32>
    %120 = vector.extract_strided_slice %14 {offsets = [3, 0, 0], sizes = [1, 16, 16], strides = [1, 1, 1]} : vector<4x16x16xf32> to vector<1x16x16xf32>
    %121 = vector.shape_cast %120 : vector<1x16x16xf32> to vector<16x16xf32>
    %122 = arith.addf %119, %121 : vector<16x16xf32>
    %cst_68 = arith.constant dense<0xFF800000> : vector<16xf32>
    %123 = vector.multi_reduction <maximumf>, %122, %cst_68 [1] : vector<16x16xf32> to vector<16xf32>
    %124 = vector.shape_cast %123 : vector<16xf32> to vector<16x1xf32>
    %125 = vector.broadcast %124 : vector<16x1xf32> to vector<16x16xf32>
    %126 = arith.subf %122, %125 : vector<16x16xf32>
    %127 = math.exp %126 : vector<16x16xf32>
    %cst_69 = arith.constant dense<0.000000e+00> : vector<16xf32>
    %128 = vector.multi_reduction <add>, %127, %cst_69 [1] : vector<16x16xf32> to vector<16xf32>
    %129 = vector.shape_cast %128 : vector<16xf32> to vector<16x1xf32>
    %130 = tpu.reciprocal %129 {approx = true} : vector<16x1xf32> -> vector<16x1xf32>
    %131 = vector.broadcast %130 : vector<16x1xf32> to vector<16x16xf32>
    %132 = arith.mulf %127, %131 : vector<16x16xf32>
    %c0_70 = arith.constant 0 : index
    %c0_71 = arith.constant 0 : index
    %c0_72 = arith.constant 0 : index
    %c48 = arith.constant 48 : index
    %133 = vector.load %arg11[%c0_70, %c0_71, %c0_72, %c48] : memref<1x1x16x64xf32, #tpu.memory_space<vmem>>, vector<1x1x16x16xf32>
    %134 = vector.shape_cast %133 : vector<1x1x16x16xf32> to vector<16x16xf32>
    %135 = vector.shape_cast %132 : vector<16x16xf32> to vector<1x1x16x16xf32>
    tpu.vector_store %arg11[%c0_70, %c0_71, %c0_72, %c48], %135 {strides = array<i32>} : memref<1x1x16x64xf32, #tpu.memory_space<vmem>>, vector<1x1x16x16xf32>,
    %136 = arith.truncf %132 : vector<16x16xf32> to vector<16x16xbf16>
    %cst_73 = arith.constant dense<0.000000e+00> : vector<16x32xf32>
    %137 = tpu.matmul %136, %1, %cst_73 {dimension_numbers = #tpu.dot_dimension_numbers<[1], [0], [0], [1], [0, 0, 1, 1], [], []>} : vector<16x16xbf16>, vector<16x32xbf16>, vector<16x32xf32> -> vector<16x32xf32>
    %138 = arith.truncf %137 : vector<16x32xf32> to vector<16x32xbf16>
    %c3 = arith.constant 3 : index
    %c0_74 = arith.constant 0 : index
    %c0_75 = arith.constant 0 : index
    %139 = vector.load %arg8[%c3, %c0_74, %c0_75] : memref<4x32x8xbf16, #tpu.memory_space<vmem>>, vector<1x32x8xbf16>
    %140 = vector.shape_cast %139 : vector<1x32x8xbf16> to vector<32x8xbf16>
    %cst_76 = arith.constant dense<0.000000e+00> : vector<16x8xf32>
    %141 = tpu.matmul %138, %140, %cst_76 {dimension_numbers = #tpu.dot_dimension_numbers<[1], [0], [0], [1], [0, 0, 1, 1], [], []>} : vector<16x32xbf16>, vector<32x8xbf16>, vector<16x8xf32> -> vector<16x8xf32>
    %c0_77 = arith.constant 0 : index
    %c24 = arith.constant 24 : index
    %142 = vector.load %arg9[%c0_77, %c24] : memref<1x32xf32, #tpu.memory_space<vmem>>, vector<1x8xf32>
    %143 = vector.broadcast %142 : vector<1x8xf32> to vector<16x8xf32>
    %144 = arith.addf %141, %143 : vector<16x8xf32>
    %c0_78 = arith.constant 0 : index
    %c0_79 = arith.constant 0 : index
    %c0_80 = arith.constant 0 : index
    %c24_81 = arith.constant 24 : index
    %145 = vector.load %arg10[%c0_78, %c0_79, %c0_80, %c24_81] : memref<1x1x16x32xf32, #tpu.memory_space<vmem>>, vector<1x1x16x8xf32>
    %146 = vector.shape_cast %145 : vector<1x1x16x8xf32> to vector<16x8xf32>
    %147 = vector.shape_cast %144 : vector<16x8xf32> to vector<1x1x16x8xf32>
    tpu.vector_store %arg10[%c0_78, %c0_79, %c0_80, %c24_81], %147 {strides = array<i32>} : memref<1x1x16x32xf32, #tpu.memory_space<vmem>>, vector<1x1x16x8xf32>,
    return
  }
  func.func @transform_0(%arg0: i32, %arg1: i32) -> (i32, i32, i32, i32) {
    %c0_i32 = arith.constant 0 : i32
    %c0_i32_0 = arith.constant 0 : i32
    %c0_i32_1 = arith.constant 0 : i32
    return %arg0, %arg1, %c0_i32, %c0_i32_0 : i32, i32, i32, i32
  }
  func.func @transform_1(%arg0: i32, %arg1: i32) -> (i32, i32, i32, i32) {
    %c0_i32 = arith.constant 0 : i32
    %c0_i32_0 = arith.constant 0 : i32
    %c0_i32_1 = arith.constant 0 : i32
    return %arg0, %arg1, %c0_i32, %c0_i32_0 : i32, i32, i32, i32
  }
  func.func @transform_2(%arg0: i32, %arg1: i32) -> (i32, i32) {
    %c0_i32 = arith.constant 0 : i32
    %c0_i32_0 = arith.constant 0 : i32
    %c0_i32_1 = arith.constant 0 : i32
    return %c0_i32, %c0_i32_0 : i32, i32
  }
  func.func @transform_3(%arg0: i32, %arg1: i32) -> (i32, i32) {
    %c0_i32 = arith.constant 0 : i32
    %c0_i32_0 = arith.constant 0 : i32
    %c0_i32_1 = arith.constant 0 : i32
    return %c0_i32, %c0_i32_0 : i32, i32
  }
  func.func @transform_4(%arg0: i32, %arg1: i32) -> (i32, i32) {
    %c0_i32 = arith.constant 0 : i32
    %c0_i32_0 = arith.constant 0 : i32
    %c0_i32_1 = arith.constant 0 : i32
    return %c0_i32, %c0_i32_0 : i32, i32
  }
  func.func @transform_5(%arg0: i32, %arg1: i32) -> (i32, i32) {
    %c0_i32 = arith.constant 0 : i32
    %c0_i32_0 = arith.constant 0 : i32
    %c0_i32_1 = arith.constant 0 : i32
    return %c0_i32, %c0_i32_0 : i32, i32
  }
  func.func @transform_6(%arg0: i32, %arg1: i32) -> (i32, i32, i32) {
    %c0_i32 = arith.constant 0 : i32
    %c0_i32_0 = arith.constant 0 : i32
    %c0_i32_1 = arith.constant 0 : i32
    %c0_i32_2 = arith.constant 0 : i32
    return %c0_i32, %c0_i32_0, %c0_i32_1 : i32, i32, i32
  }
  func.func @transform_7(%arg0: i32, %arg1: i32) -> (i32, i32) {
    %c0_i32 = arith.constant 0 : i32
    %c0_i32_0 = arith.constant 0 : i32
    %c0_i32_1 = arith.constant 0 : i32
    return %c0_i32, %c0_i32_0 : i32, i32
  }
  func.func @transform_8(%arg0: i32, %arg1: i32) -> (i32, i32, i32, i32) {
    %c0_i32 = arith.constant 0 : i32
    %c0_i32_0 = arith.constant 0 : i32
    %c0_i32_1 = arith.constant 0 : i32
    return %arg0, %arg1, %c0_i32, %c0_i32_0 : i32, i32, i32, i32
  }
  func.func @transform_9(%arg0: i32, %arg1: i32) -> (i32, i32, i32, i32) {
    %c0_i32 = arith.constant 0 : i32
    %c0_i32_0 = arith.constant 0 : i32
    %c0_i32_1 = arith.constant 0 : i32
    return %arg0, %arg1, %c0_i32, %c0_i32_0 : i32, i32, i32, i32
  }
}

</mosaic_0001>

<llo_original>
// kernel: tpu_custom_call.1
$region0: #{tpu_custom_call.1}
  #allocation0 [shape = 'u32[]', space=smem, size = 0x4, offset = 0x4, fixed_abs, tag = 'smem constant byte address 0x4 - core index']
  #allocation1 [shape = 'u32[72,128]{1,0:T(1,128)}', space=vmem, size = 0x9000, scoped, tag = 'internal scratch']
  %s0 = inlined_call_operand.vmem [shape: bf16[2,4,16,32], index: 0, kind: input, shape index: {}]
  %s1 = inlined_call_operand.hbm [shape: bf16[2,4,16,256], index: 1, kind: input, shape index: {}]
  %s2 = inlined_call_operand.vmem [shape: bf16[4,16], index: 2, kind: input, shape index: {}]
  %s3 = inlined_call_operand.vmem [shape: f32[4,1], index: 3, kind: input, shape index: {}]
  %s4 = inlined_call_operand.vmem [shape: bf16[32,64], index: 4, kind: input, shape index: {}]
  %s5 = inlined_call_operand.vmem [shape: f32[1,64], index: 5, kind: input, shape index: {}]
  %s6 = inlined_call_operand.vmem [shape: bf16[4,32,8], index: 6, kind: input, shape index: {}]
  %s7 = inlined_call_operand.vmem [shape: f32[1,32], index: 7, kind: input, shape index: {}]
  %s8 = inlined_call_operand.hbm [shape: f32[2,4,16,32], index: 8, kind: output, shape index: {0}]
  %s9 = inlined_call_operand.hbm [shape: f32[2,4,16,64], index: 9, kind: output, shape index: {1}]
  %10 = xla_tuple %s8, %s9
  %s11 = sld [smem:[#allocation0]]
  $region77: #{tpu_custom_call.1} parent=0
    _
  %s13 = ssub.s32 1, %s11
  %s14 = scalar_select 0, %s13, %s11
  $region1: #{tpu_custom_call.1} parent=0
    #allocation2 [shape = 'u8[16384]{0}', space=vmem, size = 0x4000, scoped, tag = 'input window, operand 1']
    #allocation3 [shape = 's32[2]{0}', space=sflag, size = 0x8, scoped, tag = 'scoped memory for tpu_custom_call.1']
    #allocation4 [shape = 's32[2]{0}', space=sflag, size = 0x8, scoped, tag = 'scoped memory for tpu_custom_call.1']
    #allocation5 [shape = 'u8[16384]{0}', space=vmem, size = 0x4000, scoped, tag = 'output window, operand 0']
    #allocation6 [shape = 'u8[16384]{0}', space=vmem, size = 0x4000, scoped, tag = 'output window, operand 1']
    #allocation7 [shape = 's32[2]{0}', space=sflag, size = 0x8, scoped, tag = 'scoped memory for tpu_custom_call.1']
    %15 = vsyncpa [#allocation3], 0
    %s16 = scalar_lea.sflag [#allocation3], 1
    %17 = vsyncpa %s16, 0
    %18 = vsyncpa [#allocation4], 0
    %s19 = scalar_lea.sflag [#allocation4], 1
    %20 = vsyncpa %s19, 0
    %21 = vsyncpa [#allocation7], 0
    %s22 = scalar_lea.sflag [#allocation7], 1
    %23 = vsyncpa %s22, 0
    loop: start=0, step=1, limit=10
    $region2: #{tpu_custom_call.1} parent=1 // loop_pre_header
      _
    $region3: #{tpu_custom_call.1} parent=1 // loop_header
      %s25 = sphi 0, %s29
      %p26 = scmp.ge.s32.totalorder %s25, 10
      %s32 = sphi 0, %s44
      %s33 = sphi 0, %s40
      %s34 = sphi 0, %s32
      %s35 = sphi 0, %s33
      %s36 = sphi 0, %s34
      %s37 = sphi 0, %s35
      %s49 = sphi 0, %s51
      %s52 = sphi 0, %s49
      %s53 = sphi 0, %s52
      %s69 = sphi 0, %s53
      %s77 = sphi 0, %s79
      %s80 = sphi 0, %s77
      %s81 = sphi 0, %s80
      %s97 = sphi 0, %s81
      %s101 = sphi 0, %s101
      %s103 = sphi 0, %s101
      %s104 = sphi 0, %s103
      %s118 = sphi 0, %s104
      %s122 = sphi 0, %s122
      %s124 = sphi 0, %s122
      %s125 = sphi 0, %s124
      %s139 = sphi 0, %s125
      %s143 = sphi 0, %s143
      %s145 = sphi 0, %s143
      %s146 = sphi 0, %s145
      %s160 = sphi 0, %s146
      %s164 = sphi 0, %s164
      %s166 = sphi 0, %s164
      %s167 = sphi 0, %s166
      %s181 = sphi 0, %s167
      %s185 = sphi 0, %s185
      %s187 = sphi 0, %s185
      %s188 = sphi 0, %s187
      %s202 = sphi 0, %s188
      %s206 = sphi 0, %s206
      %s208 = sphi 0, %s206
      %s209 = sphi 0, %s208
      %s223 = sphi 0, %s209
      %s231 = sphi 0, %s233
      %s234 = sphi 0, %s231
      %s235 = sphi 0, %s234
      %s251 = sphi 0, %s235
      %s259 = sphi 0, %s261
      %s262 = sphi 0, %s259
      %s263 = sphi 0, %s262
      %s279 = sphi 0, %s263
    $region4: #{tpu_custom_call.1} parent=1 // loop_header_branch
      %28 = sbr.rel (%p26) target = $region8
    $region5: #{tpu_custom_call.1} parent=1 // loop_body
      %s30 = ssub.s32 %s25, 1
      %s31 = ssub.s32 %s25, 2
      %s38 = sadd.s32 1, %s33
      %p39 = scmp.ge.s32.totalorder %s38, 4
      %s40 = scalar_select %p39, 0, %s38
      %s41 = sadd.s32 1, %s32
      %s42 = scalar_select %p39, %s41, %s32
      %p43 = scmp.ge.s32.totalorder %s42, 2
      %s44 = scalar_select %p43, 0, %s42
      %s45 = ssub.s32 %s32, %s44
      %s46 = ssub.s32 %s33, %s40
      %s47 = sor.u32 %s45, %s46
      %p48 = scmp.eq.s32.totalorder %s47, 0
      %s50 = sadd.s32 %s49, 1
      %s51 = scalar_select %p48, %s49, %s50
      %p54 = pneg %p48
      %p55 = scmp.eq.s32.totalorder %s25, 7
      %p56 = por %p54, %p55
      %p57 = scmp.ne.s32.totalorder %s49, %s52
      %p58 = scmp.eq.s32.totalorder %s25, 0
      %p59 = por %p57, %p58
      %p60 = scmp.ne.s32.totalorder %s49, %s52
      %p61 = scmp.eq.s32.totalorder %s30, 7
      %p62 = por %p60, %p61
      %p63 = scmp.ne.s32.totalorder %s52, %s53
      %p64 = scmp.eq.s32.totalorder %s30, 0
      %p65 = por %p63, %p64
      %p66 = scmp.ne.s32.totalorder %s52, %s53
      %p67 = scmp.eq.s32.totalorder %s31, 7
      %p68 = por %p66, %p67
      %p70 = scmp.ne.s32.totalorder %s53, %s69
      %p71 = scmp.eq.s32.totalorder %s31, 0
      %p72 = por %p70, %p71
      %s73 = ssub.s32 %s32, %s44
      %s74 = ssub.s32 %s33, %s40
      %s75 = sor.u32 %s73, %s74
      %p76 = scmp.eq.s32.totalorder %s75, 0
      %s78 = sadd.s32 %s77, 1
      %s79 = scalar_select %p76, %s77, %s78
      %p82 = pneg %p76
      %p83 = scmp.eq.s32.totalorder %s25, 7
      %p84 = por %p82, %p83
      %p85 = scmp.ne.s32.totalorder %s77, %s80
      %p86 = scmp.eq.s32.totalorder %s25, 0
      %p87 = por %p85, %p86
      %p88 = scmp.ne.s32.totalorder %s77, %s80
      %p89 = scmp.eq.s32.totalorder %s30, 7
      %p90 = por %p88, %p89
      %p91 = scmp.ne.s32.totalorder %s80, %s81
      %p92 = scmp.eq.s32.totalorder %s30, 0
      %p93 = por %p91, %p92
      %p94 = scmp.ne.s32.totalorder %s80, %s81
      %p95 = scmp.eq.s32.totalorder %s31, 7
      %p96 = por %p94, %p95
      %p98 = scmp.ne.s32.totalorder %s81, %s97
      %p99 = scmp.eq.s32.totalorder %s31, 0
      %p100 = por %p98, %p99
      %s102 = sadd.s32 %s101, 1
      %p105 = scmp.eq.s32.totalorder %s25, 7
      %p106 = scmp.ne.s32.totalorder %s101, %s103
      %p107 = scmp.eq.s32.totalorder %s25, 0
      %p108 = por %p106, %p107
      %p109 = scmp.ne.s32.totalorder %s101, %s103
      %p110 = scmp.eq.s32.totalorder %s30, 7
      %p111 = por %p109, %p110
      %p112 = scmp.ne.s32.totalorder %s103, %s104
      %p113 = scmp.eq.s32.totalorder %s30, 0
      %p114 = por %p112, %p113
      %p115 = scmp.ne.s32.totalorder %s103, %s104
      %p116 = scmp.eq.s32.totalorder %s31, 7
      %p117 = por %p115, %p116
      %p119 = scmp.ne.s32.totalorder %s104, %s118
      %p120 = scmp.eq.s32.totalorder %s31, 0
      %p121 = por %p119, %p120
      %s123 = sadd.s32 %s122, 1
      %p126 = scmp.eq.s32.totalorder %s25, 7
      %p127 = scmp.ne.s32.totalorder %s122, %s124
      %p128 = scmp.eq.s32.totalorder %s25, 0
      %p129 = por %p127, %p128
      %p130 = scmp.ne.s32.totalorder %s122, %s124
      %p131 = scmp.eq.s32.totalorder %s30, 7
      %p132 = por %p130, %p131
      %p133 = scmp.ne.s32.totalorder %s124, %s125
      %p134 = scmp.eq.s32.totalorder %s30, 0
      %p135 = por %p133, %p134
      %p136 = scmp.ne.s32.totalorder %s124, %s125
      %p137 = scmp.eq.s32.totalorder %s31, 7
      %p138 = por %p136, %p137
      %p140 = scmp.ne.s32.totalorder %s125, %s139
      %p141 = scmp.eq.s32.totalorder %s31, 0
      %p142 = por %p140, %p141
      %s144 = sadd.s32 %s143, 1
      %p147 = scmp.eq.s32.totalorder %s25, 7
      %p148 = scmp.ne.s32.totalorder %s143, %s145
      %p149 = scmp.eq.s32.totalorder %s25, 0
      %p150 = por %p148, %p149
      %p151 = scmp.ne.s32.totalorder %s143, %s145
      %p152 = scmp.eq.s32.totalorder %s30, 7
      %p153 = por %p151, %p152
      %p154 = scmp.ne.s32.totalorder %s145, %s146
      %p155 = scmp.eq.s32.totalorder %s30, 0
      %p156 = por %p154, %p155
      %p157 = scmp.ne.s32.totalorder %s145, %s146
      %p158 = scmp.eq.s32.totalorder %s31, 7
      %p159 = por %p157, %p158
      %p161 = scmp.ne.s32.totalorder %s146, %s160
      %p162 = scmp.eq.s32.totalorder %s31, 0
      %p163 = por %p161, %p162
      %s165 = sadd.s32 %s164, 1
      %p168 = scmp.eq.s32.totalorder %s25, 7
      %p169 = scmp.ne.s32.totalorder %s164, %s166
      %p170 = scmp.eq.s32.totalorder %s25, 0
      %p171 = por %p169, %p170
      %p172 = scmp.ne.s32.totalorder %s164, %s166
      %p173 = scmp.eq.s32.totalorder %s30, 7
      %p174 = por %p172, %p173
      %p175 = scmp.ne.s32.totalorder %s166, %s167
      %p176 = scmp.eq.s32.totalorder %s30, 0
      %p177 = por %p175, %p176
      %p178 = scmp.ne.s32.totalorder %s166, %s167
      %p179 = scmp.eq.s32.totalorder %s31, 7
      %p180 = por %p178, %p179
      %p182 = scmp.ne.s32.totalorder %s167, %s181
      %p183 = scmp.eq.s32.totalorder %s31, 0
      %p184 = por %p182, %p183
      %s186 = sadd.s32 %s185, 1
      %p189 = scmp.eq.s32.totalorder %s25, 7
      %p190 = scmp.ne.s32.totalorder %s185, %s187
      %p191 = scmp.eq.s32.totalorder %s25, 0
      %p192 = por %p190, %p191
      %p193 = scmp.ne.s32.totalorder %s185, %s187
      %p194 = scmp.eq.s32.totalorder %s30, 7
      %p195 = por %p193, %p194
      %p196 = scmp.ne.s32.totalorder %s187, %s188
      %p197 = scmp.eq.s32.totalorder %s30, 0
      %p198 = por %p196, %p197
      %p199 = scmp.ne.s32.totalorder %s187, %s188
      %p200 = scmp.eq.s32.totalorder %s31, 7
      %p201 = por %p199, %p200
      %p203 = scmp.ne.s32.totalorder %s188, %s202
      %p204 = scmp.eq.s32.totalorder %s31, 0
      %p205 = por %p203, %p204
      %s207 = sadd.s32 %s206, 1
      %p210 = scmp.eq.s32.totalorder %s25, 7
      %p211 = scmp.ne.s32.totalorder %s206, %s208
      %p212 = scmp.eq.s32.totalorder %s25, 0
      %p213 = por %p211, %p212
      %p214 = scmp.ne.s32.totalorder %s206, %s208
      %p215 = scmp.eq.s32.totalorder %s30, 7
      %p216 = por %p214, %p215
      %p217 = scmp.ne.s32.totalorder %s208, %s209
      %p218 = scmp.eq.s32.totalorder %s30, 0
      %p219 = por %p217, %p218
      %p220 = scmp.ne.s32.totalorder %s208, %s209
      %p221 = scmp.eq.s32.totalorder %s31, 7
      %p222 = por %p220, %p221
      %p224 = scmp.ne.s32.totalorder %s209, %s223
      %p225 = scmp.eq.s32.totalorder %s31, 0
      %p226 = por %p224, %p225
      %s227 = ssub.s32 %s32, %s44
      %s228 = ssub.s32 %s33, %s40
      %s229 = sor.u32 %s227, %s228
      %p230 = scmp.eq.s32.totalorder %s229, 0
      %s232 = sadd.s32 %s231, 1
      %s233 = scalar_select %p230, %s231, %s232
      %p236 = pneg %p230
      %p237 = scmp.eq.s32.totalorder %s25, 7
      %p238 = por %p236, %p237
      %p239 = scmp.ne.s32.totalorder %s231, %s234
      %p240 = scmp.eq.s32.totalorder %s25, 0
      %p241 = por %p239, %p240
      %p242 = scmp.ne.s32.totalorder %s231, %s234
      %p243 = scmp.eq.s32.totalorder %s30, 7
      %p244 = por %p242, %p243
      %p245 = scmp.ne.s32.totalorder %s234, %s235
      %p246 = scmp.eq.s32.totalorder %s30, 0
      %p247 = por %p245, %p246
      %p248 = scmp.ne.s32.totalorder %s234, %s235
      %p249 = scmp.eq.s32.totalorder %s31, 7
      %p250 = por %p248, %p249
      %p252 = scmp.ne.s32.totalorder %s235, %s251
      %p253 = scmp.eq.s32.totalorder %s31, 0
      %p254 = por %p252, %p253
      %s255 = ssub.s32 %s32, %s44
      %s256 = ssub.s32 %s33, %s40
      %s257 = sor.u32 %s255, %s256
      %p258 = scmp.eq.s32.totalorder %s257, 0
      %s260 = sadd.s32 %s259, 1
      %s261 = scalar_select %p258, %s259, %s260
      %p264 = pneg %p258
      %p265 = scmp.eq.s32.totalorder %s25, 7
      %p266 = por %p264, %p265
      %p267 = scmp.ne.s32.totalorder %s259, %s262
      %p268 = scmp.eq.s32.totalorder %s25, 0
      %p269 = por %p267, %p268
      %p270 = scmp.ne.s32.totalorder %s259, %s262
      %p271 = scmp.eq.s32.totalorder %s30, 7
      %p272 = por %p270, %p271
      %p273 = scmp.ne.s32.totalorder %s262, %s263
      %p274 = scmp.eq.s32.totalorder %s30, 0
      %p275 = por %p273, %p274
      %p276 = scmp.ne.s32.totalorder %s262, %s263
      %p277 = scmp.eq.s32.totalorder %s31, 7
      %p278 = por %p276, %p277
      %p280 = scmp.ne.s32.totalorder %s263, %s279
      %p281 = scmp.eq.s32.totalorder %s31, 0
      %p282 = por %p280, %p281
      %p283 = scmp.le.s32.totalorder 1, %s25
      %p284 = scmp.lt.s32.totalorder %s25, 9
      %p285 = pnand %p283, %p284
      %p286 = pneg %p285
      // Predicated region
      $region9: #{tpu_custom_call.1} parent=5 // pred_check
        _
      $region10: #{tpu_custom_call.1} parent=5 // pred_check_branch
        %288 = sbr.rel (%p285) target = $region12
      $region11: #{tpu_custom_call.1} parent=5 // pred_region
        %s289 = ssub.s32 %s25, 1
        // Predicated region
        $region13: #{tpu_custom_call.1} parent=11 // pred_check
          %p290 = pneg %p114
        $region14: #{tpu_custom_call.1} parent=11 // pred_check_branch
          %292 = sbr.rel (%p290) target = $region16
        $region15: #{tpu_custom_call.1} parent=11 // pred_region
          _
        $region16: #{tpu_custom_call.1} parent=11 // pred_fallthru
          _
        // Predicated region
        $region17: #{tpu_custom_call.1} parent=11 // pred_check
          %p293 = pneg %p135
        $region18: #{tpu_custom_call.1} parent=11 // pred_check_branch
          %295 = sbr.rel (%p293) target = $region20
        $region19: #{tpu_custom_call.1} parent=11 // pred_region
          _
        $region20: #{tpu_custom_call.1} parent=11 // pred_fallthru
          _
        // Predicated region
        $region21: #{tpu_custom_call.1} parent=11 // pred_check
          %p296 = pneg %p156
        $region22: #{tpu_custom_call.1} parent=11 // pred_check_branch
          %298 = sbr.rel (%p296) target = $region24
        $region23: #{tpu_custom_call.1} parent=11 // pred_region
          _
        $region24: #{tpu_custom_call.1} parent=11 // pred_fallthru
          _
        // Predicated region
        $region25: #{tpu_custom_call.1} parent=11 // pred_check
          %p299 = pneg %p177
        $region26: #{tpu_custom_call.1} parent=11 // pred_check_branch
          %301 = sbr.rel (%p299) target = $region28
        $region27: #{tpu_custom_call.1} parent=11 // pred_region
          _
        $region28: #{tpu_custom_call.1} parent=11 // pred_fallthru
          _
        // Predicated region
        $region29: #{tpu_custom_call.1} parent=11 // pred_check
          %p302 = pneg %p198
        $region30: #{tpu_custom_call.1} parent=11 // pred_check_branch
          %304 = sbr.rel (%p302) target = $region32
        $region31: #{tpu_custom_call.1} parent=11 // pred_region
          _
        $region32: #{tpu_custom_call.1} parent=11 // pred_fallthru
          _
        // Predicated region
        $region33: #{tpu_custom_call.1} parent=11 // pred_check
          %p305 = pneg %p219
        $region34: #{tpu_custom_call.1} parent=11 // pred_check_branch
          %307 = sbr.rel (%p305) target = $region36
        $region35: #{tpu_custom_call.1} parent=11 // pred_region
          _
        $region36: #{tpu_custom_call.1} parent=11 // pred_fallthru
          _
      $region12: #{tpu_custom_call.1} parent=5 // pred_fallthru
        _
      %p308 = scmp.lt.s32.totalorder %s25, 8
      // Predicated region
      $region37: #{tpu_custom_call.1} parent=5 // pred_check
        %p309 = pneg %p308
      $region38: #{tpu_custom_call.1} parent=5 // pred_check_branch
        %311 = sbr.rel (%p309) target = $region40
      $region39: #{tpu_custom_call.1} parent=5 // pred_region
        // Predicated region
        $region41: #{tpu_custom_call.1} parent=39 // pred_check
          %p312 = pneg %p59
        $region42: #{tpu_custom_call.1} parent=39 // pred_check_branch
          %314 = sbr.rel (%p312) target = $region44
        $region43: #{tpu_custom_call.1} parent=39 // pred_region
          %p315 = scmp.lt.s32.totalorder %s32, 1
          %s316 = scalar_select %p315, %s32, 1
          %p317 = scmp.lt.s32.totalorder %s33, 3
          %s318 = scalar_select %p317, %s33, 3
          %s319 = smul.addr %s318, 2
          %s320 = smul.addr %s316, 8
          %s321 = sadd.s32 %s319, %s320
          %s322 = smul.addr %s321, 4
          %s323 = scalar_lea.vmem %s0, %s322
        $region44: #{tpu_custom_call.1} parent=39 // pred_fallthru
          _
        // Predicated region
        $region45: #{tpu_custom_call.1} parent=39 // pred_check
          %p324 = pneg %p87
        $region46: #{tpu_custom_call.1} parent=39 // pred_check_branch
          %326 = sbr.rel (%p324) target = $region48
        $region47: #{tpu_custom_call.1} parent=39 // pred_region
          %s327 = sand.u32 %s77, 1
          %s328 = scalar_lea.sflag [#allocation3], %s327
          %s329 = sand.u32 %s77, 1
          %s330 = smul.addr %s329, 16
          %s331 = scalar_lea.vmem [#allocation2], %s330
          %333 = vsyncadd %s328, 0
          %s334 = smul.addr %s33, 4
          %s335 = smul.addr %s32, 16
          %s336 = sadd.s32 %s334, %s335
          %s337 = smul.addr %s336, 4
          %s338 = scalar_lea.hbm %s1, %s337
          %s339 = sshll.u32 %s338, 4
          %s340 = int_to_ptr.hbm [resolvable:$true] %s339
          %s341 = sshll.u32 %s331, 4
          %s342 = int_to_ptr.vmem [resolvable:$true] %s341
          %347 = dma.hbm_to_vmem [thread:$0]  %s340, 256, %s342, %s328, 128, 128, 8
        $region48: #{tpu_custom_call.1} parent=39 // pred_fallthru
          _
      $region40: #{tpu_custom_call.1} parent=5 // pred_fallthru
        _
      %p348 = scmp.le.s32.totalorder 1, %s25
      %p349 = scmp.lt.s32.totalorder %s25, 9
      %p350 = pnand %p348, %p349
      %p351 = pneg %p350
      // Predicated region
      $region49: #{tpu_custom_call.1} parent=5 // pred_check
        _
      $region50: #{tpu_custom_call.1} parent=5 // pred_check_branch
        %353 = sbr.rel (%p350) target = $region52
      $region51: #{tpu_custom_call.1} parent=5 // pred_region
        %s354 = ssub.s32 %s25, 1
        %s355 = sand.u32 %s80, 1
        %s356 = scalar_lea.sflag [#allocation3], %s355
        %s357 = sand.u32 %s80, 1
        %s358 = smul.addr %s357, 16
        %s359 = scalar_lea.vmem [#allocation2], %s358
        // Predicated region
        $region53: #{tpu_custom_call.1} parent=51 // pred_check
          %p360 = pneg %p93
        $region54: #{tpu_custom_call.1} parent=51 // pred_check_branch
          %362 = sbr.rel (%p360) target = $region56
        $region55: #{tpu_custom_call.1} parent=51 // pred_region
          %364 = dma.done %s356, 256
        $region56: #{tpu_custom_call.1} parent=51 // pred_fallthru
          _
        %p365 = scmp.lt.s32.totalorder %s34, 1
        %s366 = scalar_select %p365, %s34, 1
        %p367 = scmp.lt.s32.totalorder %s35, 3
        %s368 = scalar_select %p367, %s35, 3
        %s369 = smul.addr %s368, 2
        %s370 = smul.addr %s366, 8
        %s371 = sadd.s32 %s369, %s370
        %s372 = smul.addr %s371, 4
        %s373 = scalar_lea.vmem %s0, %s372
        %p374 = pneg %p65
        %p375 = pneg %p62
        %s376 = sand.u32 %s80, 1
        %s377 = scalar_lea.sflag [#allocation3], %s376
        %s378 = sand.u32 %s80, 1
        %s379 = smul.addr %s378, 16
        %s380 = scalar_lea.vmem [#allocation2], %s379
        %p381 = pneg %p93
        %p382 = pneg %p90
        %p383 = pneg %p114
        %p384 = pneg %p111
        %p385 = pneg %p135
        %p386 = pneg %p132
        %p387 = pneg %p156
        %p388 = pneg %p153
        %p389 = pneg %p177
        %p390 = pneg %p174
        %p391 = pneg %p198
        %p392 = pneg %p195
        %p393 = pneg %p219
        %p394 = pneg %p216
        %p395 = pneg %p247
        %p396 = pneg %p244
        %s397 = sand.u32 %s234, 1
        %s398 = scalar_lea.sflag [#allocation4], %s397
        %s399 = sand.u32 %s234, 1
        %s400 = smul.addr %s399, 16
        %s401 = scalar_lea.vmem [#allocation5], %s400
        %p402 = pneg %p275
        %p403 = pneg %p272
        %s404 = sand.u32 %s262, 1
        %s405 = scalar_lea.sflag [#allocation7], %s404
        %s406 = sand.u32 %s262, 1
        %s407 = smul.addr %s406, 16
        %s408 = scalar_lea.vmem [#allocation6], %s407
        %p409 = scmp.lt.s32.totalorder %s34, 1
        %s410 = scalar_select %p409, %s34, 1
        %p411 = scmp.lt.s32.totalorder %s35, 3
        %s412 = scalar_select %p411, %s35, 3
        %s413 = smul.addr %s412, 2
        %s414 = smul.addr %s410, 8
        %s415 = sadd.s32 %s413, %s414
        %s416 = smul.addr %s415, 4
        %s417 = scalar_lea.vmem %s0, %s416
        %v419 = vld [vmem:[%s417] sm:$0xf]
        %v420 = vld [vmem:[%s417 + $0x4] sm:$0xf]
        %v421 = vld [vmem:[%s359] sm:$0xff]
        %v422 = vld [vmem:[%s359 + $0x8] sm:$0xff]
        %v423 = vld [vmem:[%s2] sm:$0x3]
        %v424 = vld [vmem:[%s3] sm:$0xf]
        %426 = vset.pattern.permute.xlu0 0
        %427 = vperm.xlu0 %426, %v424
        %v428 = vpop.permute.xlu0 %427
        %v432 = vunpack.c.l.b16 %v421
        %v433 = vunpack.c.h.b16 %v421
        %v434 = vunpack.c.l.b16 %v422
        %v435 = vunpack.c.h.b16 %v422
        %v436 = vpack.c.b16 %v434, %v432
        %v437 = vpack.c.b16 %v435, %v433
        %vm440 = vcmask 130048
        %v442 = vsel %vm440, %v423, 0
        %444 = vmatpush.bf16.msra.mxu0 0
        %445 = vmatpush.bf16.msra.mxu0 0
        %446 = vmatpush.bf16.msra.mxu0 0
        %447 = vmatpush.bf16.msra.mxu0 0
        %448 = vmatpush.bf16.msra.mxu0 0
        %449 = vmatpush.bf16.msra.mxu0 0
        %450 = vmatpush.bf16.msra.mxu0 0
        %451 = vmatpush.bf16.msra.mxu0 %v436
        %452 = vmatmul.bf16.gmra.mxu0 %v442
        %v453 = vpop.f32.mrf.mxu0
        %v454 = vadd.f32 %v428, %v453
        %v455 = vpop.f32.mrf.mxu0
        %456 = vdwg.mxu0
        %457 = vmatpush.bf16.msra.mxu0 0
        %458 = vmatpush.bf16.msra.mxu0 0
        %459 = vmatpush.bf16.msra.mxu0 0
        %460 = vmatpush.bf16.msra.mxu0 0
        %461 = vmatpush.bf16.msra.mxu0 0
        %462 = vmatpush.bf16.msra.mxu0 0
        %463 = vmatpush.bf16.msra.mxu0 0
        %464 = vmatpush.bf16.msra.mxu0 %v437
        %465 = vmatmul.bf16.gmra.mxu0 %v442
        %v466 = vpop.f32.mrf.mxu0
        %v467 = vadd.f32 %v428, %v466
        %v468 = vpop.f32.mrf.mxu0
        %469 = vdwg.mxu0
        %v470 = vmax.f32 %v454, 0.0
        %v471 = vmax.f32 %v467, 0.0
        %v472 = vmax.f32 %v470, 1e-06
        %v473 = vmax.f32 %v471, 1e-06
        %v474 = vlog2.pop %v472
        %v475 = vmul.f32 %v474, 0.6931472
        %v476 = vlog2.pop %v473
        %v477 = vmul.f32 %v476, 0.6931472
        %479 = vrot.lane.b32.xlu0 %v475, 112
        %v480 = vpop.permute.xlu0 %479
        %482 = vrot.lane.b32.xlu0 %v475, 96
        %v483 = vpop.permute.xlu0 %482
        %485 = vrot.lane.b32.xlu0 %v475, 80
        %v486 = vpop.permute.xlu0 %485
        %488 = vrot.lane.b32.xlu0 %v475, 64
        %v489 = vpop.permute.xlu0 %488
        %491 = vrot.lane.b32.xlu0 %v475, 48
        %v492 = vpop.permute.xlu0 %491
        %494 = vrot.lane.b32.xlu0 %v475, 32
        %v495 = vpop.permute.xlu0 %494
        %497 = vrot.lane.b32.xlu0 %v475, 16
        %v498 = vpop.permute.xlu0 %497
        %501 = vrot.lane.b32.xlu0 %v477, 112
        %v502 = vpop.permute.xlu0 %501
        %504 = vrot.lane.b32.xlu0 %v477, 96
        %v505 = vpop.permute.xlu0 %504
        %507 = vrot.lane.b32.xlu0 %v477, 80
        %v508 = vpop.permute.xlu0 %507
        %510 = vrot.lane.b32.xlu0 %v477, 64
        %v511 = vpop.permute.xlu0 %510
        %513 = vrot.lane.b32.xlu0 %v477, 48
        %v514 = vpop.permute.xlu0 %513
        %516 = vrot.lane.b32.xlu0 %v477, 32
        %v517 = vpop.permute.xlu0 %516
        %519 = vrot.lane.b32.xlu0 %v477, 16
        %v520 = vpop.permute.xlu0 %519
        %v522 = vrot.slane %v483, 4
        %vm523 = vcmask 1047556
        %v524 = vsel %vm523, %v522, %v475
        %v526 = vunpack.c.l.s4 1983009808
        %v527 = vunpack.c.0.s8 %v526
        %v528 = vperm.slane %v524, %v527
        %v529 = vrot.slane %v486, 4
        %v530 = vsel %vm523, %v529, %v480
        %v532 = vunpack.c.l.s4 1983009808
        %v533 = vunpack.c.0.s8 %v532
        %v534 = vperm.slane %v530, %v533
        %v535 = vrot.slane %v495, 4
        %v536 = vsel %vm523, %v535, %v489
        %v538 = vunpack.c.l.s4 1983009808
        %v539 = vunpack.c.0.s8 %v538
        %v540 = vperm.slane %v536, %v539
        %v541 = vrot.slane %v498, 4
        %v542 = vsel %vm523, %v541, %v492
        %v544 = vunpack.c.l.s4 1983009808
        %v545 = vunpack.c.0.s8 %v544
        %v546 = vperm.slane %v542, %v545
        %v547 = vrot.slane %v534, 4
        %v548 = vsel %vm523, %v547, %v528
        %v549 = vrot.slane %v528, 4
        %v550 = vsel %vm523, %v534, %v549
        %v552 = vunpack.c.l.s4 1934713408
        %v553 = vunpack.c.0.s8 %v552
        %v554 = vperm.slane %v548, %v553
        %v556 = vunpack.c.l.s4 1934713408
        %v557 = vunpack.c.0.s8 %v556
        %v558 = vperm.slane %v550, %v557
        %v559 = vrot.slane %v546, 4
        %v560 = vsel %vm523, %v559, %v540
        %v561 = vrot.slane %v540, 4
        %v562 = vsel %vm523, %v546, %v561
        %v564 = vunpack.c.l.s4 1934713408
        %v565 = vunpack.c.0.s8 %v564
        %v566 = vperm.slane %v560, %v565
        %v568 = vunpack.c.l.s4 1934713408
        %v569 = vunpack.c.0.s8 %v568
        %v570 = vperm.slane %v562, %v569
        %v571 = vrot.slane %v566, 4
        %v572 = vsel %vm523, %v571, %v554
        %v573 = vrot.slane %v554, 4
        %v574 = vsel %vm523, %v566, %v573
        %v575 = vrot.slane %v570, 4
        %v576 = vsel %vm523, %v575, %v558
        %v577 = vrot.slane %v558, 4
        %v578 = vsel %vm523, %v570, %v577
        %v579 = vrot.slane %v505, 4
        %v580 = vsel %vm523, %v579, %v477
        %v582 = vunpack.c.l.s4 1983009808
        %v583 = vunpack.c.0.s8 %v582
        %v584 = vperm.slane %v580, %v583
        %v585 = vrot.slane %v508, 4
        %v586 = vsel %vm523, %v585, %v502
        %v588 = vunpack.c.l.s4 1983009808
        %v589 = vunpack.c.0.s8 %v588
        %v590 = vperm.slane %v586, %v589
        %v591 = vrot.slane %v517, 4
        %v592 = vsel %vm523, %v591, %v511
        %v594 = vunpack.c.l.s4 1983009808
        %v595 = vunpack.c.0.s8 %v594
        %v596 = vperm.slane %v592, %v595
        %v597 = vrot.slane %v520, 4
        %v598 = vsel %vm523, %v597, %v514
        %v600 = vunpack.c.l.s4 1983009808
        %v601 = vunpack.c.0.s8 %v600
        %v602 = vperm.slane %v598, %v601
        %v603 = vrot.slane %v590, 4
        %v604 = vsel %vm523, %v603, %v584
        %v605 = vrot.slane %v584, 4
        %v606 = vsel %vm523, %v590, %v605
        %v608 = vunpack.c.l.s4 1934713408
        %v609 = vunpack.c.0.s8 %v608
        %v610 = vperm.slane %v604, %v609
        %v612 = vunpack.c.l.s4 1934713408
        %v613 = vunpack.c.0.s8 %v612
        %v614 = vperm.slane %v606, %v613
        %v615 = vrot.slane %v602, 4
        %v616 = vsel %vm523, %v615, %v596
        %v617 = vrot.slane %v596, 4
        %v618 = vsel %vm523, %v602, %v617
        %v620 = vunpack.c.l.s4 1934713408
        %v621 = vunpack.c.0.s8 %v620
        %v622 = vperm.slane %v616, %v621
        %v624 = vunpack.c.l.s4 1934713408
        %v625 = vunpack.c.0.s8 %v624
        %v626 = vperm.slane %v618, %v625
        %v627 = vrot.slane %v622, 4
        %v628 = vsel %vm523, %v627, %v610
        %v629 = vrot.slane %v610, 4
        %v630 = vsel %vm523, %v622, %v629
        %v631 = vrot.slane %v626, 4
        %v632 = vsel %vm523, %v631, %v614
        %v633 = vrot.slane %v614, 4
        %v634 = vsel %vm523, %v626, %v633
        %v635 = vld [vmem:[%s4] sm:$0xf]
        %v636 = vld [vmem:[%s4 + $0x4] sm:$0xf]
        %v637 = vld [vmem:[%s4 + $0x8] sm:$0xf]
        %v638 = vld [vmem:[%s4 + $0xc] sm:$0xf]
        %v639 = vld [vmem:[%s5] sm:$0x1]
        %v641 = vperm.slane %v639, 0
        %v645 = vunpack.c.l.b16 %v419
        %v646 = vunpack.c.l.b16 %v420
        %v647 = vpack.c.b16 %v646, %v645
        %v652 = vunpack.c.l.b16 %v635
        %v653 = vunpack.c.l.b16 %v636
        %v654 = vunpack.c.l.b16 %v637
        %v655 = vunpack.c.l.b16 %v638
        %v656 = vpack.c.b16 %v653, %v652
        %v657 = vpack.c.b16 %v655, %v654
        %vm660 = vcmask 261120
        %v662 = vsel %vm660, %v647, 0
        %664 = vmatpush.bf16.msra.mxu0 0
        %665 = vmatpush.bf16.msra.mxu0 0
        %666 = vmatpush.bf16.msra.mxu0 0
        %667 = vmatpush.bf16.msra.mxu0 0
        %668 = vmatpush.bf16.msra.mxu0 0
        %669 = vmatpush.bf16.msra.mxu0 0
        %670 = vmatpush.bf16.msra.mxu0 %v657
        %671 = vmatpush.bf16.msra.mxu0 %v656
        %672 = vmatmul.bf16.gmra.mxu0 %v662
        %v673 = vpop.f32.mrf.mxu0
        %v674 = vadd.f32 %v641, %v673
        %v675 = vpop.f32.mrf.mxu0
        %v676 = vadd.f32 %v641, %v675
        %677 = vdwg.mxu0
        %v678 = vpack.c.bf16 %v674, %v674
        %v679 = vpack.c.bf16 %v676, %v676
        %v682 = vunpack.c.l.b16 %v678
        %v683 = vunpack.c.l.b16 %v679
        %v684 = vpack.c.b16 %v683, %v682
        %685 = vrot.lane.b32.xlu0 %v684, 96
        %v686 = vpop.permute.xlu0 %685
        %vm687 = vcmask 64512
        %v689 = vsel %vm687, %v684, 0
        %v692 = vsel %vm687, %v686, 0
        %694 = vmatpush.bf16.xpose.msra.mxu0 0
        %695 = vmatpush.bf16.xpose.msra.mxu0 0
        %696 = vmatpush.bf16.xpose.msra.mxu0 0
        %697 = vmatpush.bf16.xpose.msra.mxu0 0
        %698 = vmatpush.bf16.xpose.msra.mxu0 0
        %699 = vmatpush.bf16.xpose.msra.mxu0 0
        %700 = vmatpush.bf16.xpose.msra.mxu0 0
        %701 = vmatpush.bf16.xpose.msra.mxu0 %v692
        %702 = vmatmul.bf16.gmra.mxu0 %v689
        %v703 = vpop.f32.mrf.mxu0
        %v704 = vadd.f32 %v572, %v703
        %v705 = vpop.f32.mrf.mxu0
        %v706 = vadd.f32 %v628, %v705
        %707 = vdwg.mxu0
        %v708 = vsel %vm440, %v704, -inf
        %709 = vmax.xlane.f32.xlu0 %v708
        %v710 = vpop.xlane.xlu0 %709
        %v711 = vsel %vm440, %v706, -inf
        %712 = vmax.xlane.f32.xlu0 %v711
        %v713 = vpop.xlane.xlu0 %712
        %v714 = vsub.f32 %v704, %v710
        %v715 = vsub.f32 %v706, %v713
        %v716 = vmul.f32 %v714, 1.442695
        %v717 = vpow.pop %v716
        %v718 = vmul.f32 %v715, 1.442695
        %v719 = vpow.pop %v718
        %v720 = vsel %vm440, %v717, 0.0
        %721 = vadd.xlane.f32.xlu0 %v720
        %v722 = vpop.xlane.xlu0 %721
        %v723 = vsel %vm440, %v719, 0.0
        %724 = vadd.xlane.f32.xlu0 %v723
        %v725 = vpop.xlane.xlu0 %724
        %v726 = vrcp.pop %v722
        %v727 = vrcp.pop %v725
        %v728 = vmul.f32 %v717, %v726
        %v729 = vmul.f32 %v719, %v727
        %730 = vst.msk [vmem:[%s408] sm:$0xff] %vm440, %v728
        %731 = vst.msk [vmem:[%s408 + $0x8] sm:$0xff] %vm440, %v729
        %v732 = vpack.c.bf16 %v729, %v728
        %v735 = vsel %vm440, %v732, 0
        %737 = vmatpush.bf16.msra.mxu0 0
        %738 = vmatpush.bf16.msra.mxu0 0
        %739 = vmatpush.bf16.msra.mxu0 0
        %740 = vmatpush.bf16.msra.mxu0 0
        %741 = vmatpush.bf16.msra.mxu0 0
        %742 = vmatpush.bf16.msra.mxu0 0
        %743 = vmatpush.bf16.msra.mxu0 0
        %744 = vmatpush.bf16.msra.mxu0 %v647
        %745 = vmatmul.bf16.gmra.mxu0 %v735
        %v746 = vpop.f32.mrf.mxu0
        %v747 = vadd.f32 0.0, %v746
        %v748 = vpop.f32.mrf.mxu0
        %v749 = vadd.f32 0.0, %v748
        %750 = vdwg.mxu0
        %v751 = vpack.c.bf16 %v749, %v747
        %v752 = vld [vmem:[%s6] sm:$0xf]
        %v753 = vld [vmem:[%s6 + $0x4] sm:$0xf]
        %v754 = vld [vmem:[%s6 + $0x8] sm:$0xf]
        %v755 = vld [vmem:[%s6 + $0xc] sm:$0xf]
        %v756 = vld [vmem:[%s7] sm:$0x1]
        %v758 = vperm.slane %v756, 0
        %v764 = vunpack.c.l.b16 %v752
        %v765 = vunpack.c.l.b16 %v753
        %v766 = vunpack.c.l.b16 %v754
        %v767 = vunpack.c.l.b16 %v755
        %v768 = vpack.c.b16 %v765, %v764
        %v769 = vpack.c.b16 %v767, %v766
        %v773 = vsel %vm660, %v751, 0
        %775 = vmatpush.bf16.msra.mxu0 0
        %776 = vmatpush.bf16.msra.mxu0 0
        %777 = vmatpush.bf16.msra.mxu0 0
        %778 = vmatpush.bf16.msra.mxu0 0
        %779 = vmatpush.bf16.msra.mxu0 0
        %780 = vmatpush.bf16.msra.mxu0 0
        %781 = vmatpush.bf16.msra.mxu0 %v769
        %782 = vmatpush.bf16.msra.mxu0 %v768
        %783 = vmatmul.bf16.gmra.mxu0 %v773
        %v784 = vpop.f32.mrf.mxu0
        %v785 = vadd.f32 %v758, %v784
        %v786 = vpop.f32.mrf.mxu0
        %v787 = vadd.f32 %v758, %v786
        %788 = vdwg.mxu0
        %789 = vst.msk [vmem:[%s401] sm:$0xff] %vm687, %v785
        %790 = vst.msk [vmem:[%s401 + $0x8] sm:$0xff] %vm687, %v787
        %791 = vrot.lane.b32.xlu0 %v684, 120
        %v792 = vpop.permute.xlu0 %791
        %793 = vrot.lane.b32.xlu0 %v684, 88
        %v794 = vpop.permute.xlu0 %793
        %v796 = vsel %vm687, %v792, 0
        %v799 = vsel %vm687, %v794, 0
        %801 = vmatpush.bf16.xpose.msra.mxu0 0
        %802 = vmatpush.bf16.xpose.msra.mxu0 0
        %803 = vmatpush.bf16.xpose.msra.mxu0 0
        %804 = vmatpush.bf16.xpose.msra.mxu0 0
        %805 = vmatpush.bf16.xpose.msra.mxu0 0
        %806 = vmatpush.bf16.xpose.msra.mxu0 0
        %807 = vmatpush.bf16.xpose.msra.mxu0 0
        %808 = vmatpush.bf16.xpose.msra.mxu0 %v799
        %809 = vmatmul.bf16.gmra.mxu0 %v796
        %v810 = vpop.f32.mrf.mxu0
        %v811 = vadd.f32 %v574, %v810
        %v812 = vpop.f32.mrf.mxu0
        %v813 = vadd.f32 %v630, %v812
        %814 = vdwg.mxu0
        %v815 = vsel %vm440, %v811, -inf
        %816 = vmax.xlane.f32.xlu0 %v815
        %v817 = vpop.xlane.xlu0 %816
        %v818 = vsel %vm440, %v813, -inf
        %819 = vmax.xlane.f32.xlu0 %v818
        %v820 = vpop.xlane.xlu0 %819
        %v821 = vsub.f32 %v811, %v817
        %v822 = vsub.f32 %v813, %v820
        %v823 = vmul.f32 %v821, 1.442695
        %v824 = vpow.pop %v823
        %v825 = vmul.f32 %v822, 1.442695
        %v826 = vpow.pop %v825
        %v827 = vsel %vm440, %v824, 0.0
        %828 = vadd.xlane.f32.xlu0 %v827
        %v829 = vpop.xlane.xlu0 %828
        %v830 = vsel %vm440, %v826, 0.0
        %831 = vadd.xlane.f32.xlu0 %v830
        %v832 = vpop.xlane.xlu0 %831
        %v833 = vrcp.pop %v829
        %v834 = vrcp.pop %v832
        %v835 = vmul.f32 %v824, %v833
        %v836 = vmul.f32 %v826, %v834
        %839 = vrot.lane.b32.xlu0 %v835, 16
        %v840 = vpop.permute.xlu0 %839
        %841 = vrot.lane.b32.xlu0 %v836, 16
        %v842 = vpop.permute.xlu0 %841
        %vm845 = vcmask 261248
        %846 = vst.msk [vmem:[%s408] sm:$0xff] %vm845, %v840
        %847 = vst.msk [vmem:[%s408 + $0x8] sm:$0xff] %vm845, %v842
        %v848 = vpack.c.bf16 %v836, %v835
        %v850 = vsel %vm440, %v848, 0
        %852 = vmatpush.bf16.msra.mxu0 0
        %853 = vmatpush.bf16.msra.mxu0 0
        %854 = vmatpush.bf16.msra.mxu0 0
        %855 = vmatpush.bf16.msra.mxu0 0
        %856 = vmatpush.bf16.msra.mxu0 0
        %857 = vmatpush.bf16.msra.mxu0 0
        %858 = vmatpush.bf16.msra.mxu0 0
        %859 = vmatpush.bf16.msra.mxu0 %v647
        %860 = vmatmul.bf16.gmra.mxu0 %v850
        %v861 = vpop.f32.mrf.mxu0
        %v862 = vadd.f32 0.0, %v861
        %v863 = vpop.f32.mrf.mxu0
        %v864 = vadd.f32 0.0, %v863
        %865 = vdwg.mxu0
        %v866 = vpack.c.bf16 %v864, %v862
        %s867 = scalar_lea.vmem %s6, 16
        %v868 = vld [vmem:[%s867] sm:$0xf]
        %v869 = vld [vmem:[%s867 + $0x4] sm:$0xf]
        %v870 = vld [vmem:[%s867 + $0x8] sm:$0xf]
        %v871 = vld [vmem:[%s867 + $0xc] sm:$0xf]
        %v872 = vld [vmem:[%s7] sm:$0x1]
        %v874 = vperm.slane %v872, 0
        %v879 = vunpack.c.l.b16 %v868
        %v880 = vunpack.c.l.b16 %v869
        %v881 = vunpack.c.l.b16 %v870
        %v882 = vunpack.c.l.b16 %v871
        %v883 = vpack.c.b16 %v880, %v879
        %v884 = vpack.c.b16 %v882, %v881
        %887 = vrot.lane.b32.xlu0 %v874, 120
        %v888 = vpop.permute.xlu0 %887
        %v891 = vsel %vm660, %v866, 0
        %893 = vmatpush.bf16.msra.mxu0 0
        %894 = vmatpush.bf16.msra.mxu0 0
        %895 = vmatpush.bf16.msra.mxu0 0
        %896 = vmatpush.bf16.msra.mxu0 0
        %897 = vmatpush.bf16.msra.mxu0 0
        %898 = vmatpush.bf16.msra.mxu0 0
        %899 = vmatpush.bf16.msra.mxu0 %v884
        %900 = vmatpush.bf16.msra.mxu0 %v883
        %901 = vmatmul.bf16.gmra.mxu0 %v891
        %v902 = vpop.f32.mrf.mxu0
        %v903 = vadd.f32 %v888, %v902
        %v904 = vpop.f32.mrf.mxu0
        %v905 = vadd.f32 %v888, %v904
        %906 = vdwg.mxu0
        %909 = vrot.lane.b32.xlu0 %v903, 8
        %v910 = vpop.permute.xlu0 %909
        %911 = vrot.lane.b32.xlu0 %v905, 8
        %v912 = vpop.permute.xlu0 %911
        %vm915 = vcmask 130112
        %916 = vst.msk [vmem:[%s401] sm:$0xff] %vm915, %v910
        %917 = vst.msk [vmem:[%s401 + $0x8] sm:$0xff] %vm915, %v912
        %918 = vrot.lane.b32.xlu0 %v684, 112
        %v919 = vpop.permute.xlu0 %918
        %920 = vrot.lane.b32.xlu0 %v684, 80
        %v921 = vpop.permute.xlu0 %920
        %v923 = vsel %vm687, %v919, 0
        %v926 = vsel %vm687, %v921, 0
        %928 = vmatpush.bf16.xpose.msra.mxu0 0
        %929 = vmatpush.bf16.xpose.msra.mxu0 0
        %930 = vmatpush.bf16.xpose.msra.mxu0 0
        %931 = vmatpush.bf16.xpose.msra.mxu0 0
        %932 = vmatpush.bf16.xpose.msra.mxu0 0
        %933 = vmatpush.bf16.xpose.msra.mxu0 0
        %934 = vmatpush.bf16.xpose.msra.mxu0 0
        %935 = vmatpush.bf16.xpose.msra.mxu0 %v926
        %936 = vmatmul.bf16.gmra.mxu0 %v923
        %v937 = vpop.f32.mrf.mxu0
        %v938 = vadd.f32 %v576, %v937
        %v939 = vpop.f32.mrf.mxu0
        %v940 = vadd.f32 %v632, %v939
        %941 = vdwg.mxu0
        %v942 = vsel %vm440, %v938, -inf
        %943 = vmax.xlane.f32.xlu0 %v942
        %v944 = vpop.xlane.xlu0 %943
        %v945 = vsel %vm440, %v940, -inf
        %946 = vmax.xlane.f32.xlu0 %v945
        %v947 = vpop.xlane.xlu0 %946
        %v948 = vsub.f32 %v938, %v944
        %v949 = vsub.f32 %v940, %v947
        %v950 = vmul.f32 %v948, 1.442695
        %v951 = vpow.pop %v950
        %v952 = vmul.f32 %v949, 1.442695
        %v953 = vpow.pop %v952
        %v954 = vsel %vm440, %v951, 0.0
        %955 = vadd.xlane.f32.xlu0 %v954
        %v956 = vpop.xlane.xlu0 %955
        %v957 = vsel %vm440, %v953, 0.0
        %958 = vadd.xlane.f32.xlu0 %v957
        %v959 = vpop.xlane.xlu0 %958
        %v960 = vrcp.pop %v956
        %v961 = vrcp.pop %v959
        %v962 = vmul.f32 %v951, %v960
        %v963 = vmul.f32 %v953, %v961
        %966 = vrot.lane.b32.xlu0 %v962, 32
        %v967 = vpop.permute.xlu0 %966
        %968 = vrot.lane.b32.xlu0 %v963, 32
        %v969 = vpop.permute.xlu0 %968
        %vm972 = vcmask 392448
        %973 = vst.msk [vmem:[%s408] sm:$0xff] %vm972, %v967
        %974 = vst.msk [vmem:[%s408 + $0x8] sm:$0xff] %vm972, %v969
        %v975 = vpack.c.bf16 %v963, %v962
        %v977 = vsel %vm440, %v975, 0
        %979 = vmatpush.bf16.msra.mxu0 0
        %980 = vmatpush.bf16.msra.mxu0 0
        %981 = vmatpush.bf16.msra.mxu0 0
        %982 = vmatpush.bf16.msra.mxu0 0
        %983 = vmatpush.bf16.msra.mxu0 0
        %984 = vmatpush.bf16.msra.mxu0 0
        %985 = vmatpush.bf16.msra.mxu0 0
        %986 = vmatpush.bf16.msra.mxu0 %v647
        %987 = vmatmul.bf16.gmra.mxu0 %v977
        %v988 = vpop.f32.mrf.mxu0
        %v989 = vadd.f32 0.0, %v988
        %v990 = vpop.f32.mrf.mxu0
        %v991 = vadd.f32 0.0, %v990
        %992 = vdwg.mxu0
        %v993 = vpack.c.bf16 %v991, %v989
        %s994 = scalar_lea.vmem %s6, 32
        %v995 = vld [vmem:[%s994] sm:$0xf]
        %v996 = vld [vmem:[%s994 + $0x4] sm:$0xf]
        %v997 = vld [vmem:[%s994 + $0x8] sm:$0xf]
        %v998 = vld [vmem:[%s994 + $0xc] sm:$0xf]
        %v999 = vld [vmem:[%s7] sm:$0x1]
        %v1001 = vperm.slane %v999, 0
        %v1006 = vunpack.c.l.b16 %v995
        %v1007 = vunpack.c.l.b16 %v996
        %v1008 = vunpack.c.l.b16 %v997
        %v1009 = vunpack.c.l.b16 %v998
        %v1010 = vpack.c.b16 %v1007, %v1006
        %v1011 = vpack.c.b16 %v1009, %v1008
        %1014 = vrot.lane.b32.xlu0 %v1001, 112
        %v1015 = vpop.permute.xlu0 %1014
        %v1018 = vsel %vm660, %v993, 0
        %1020 = vmatpush.bf16.msra.mxu0 0
        %1021 = vmatpush.bf16.msra.mxu0 0
        %1022 = vmatpush.bf16.msra.mxu0 0
        %1023 = vmatpush.bf16.msra.mxu0 0
        %1024 = vmatpush.bf16.msra.mxu0 0
        %1025 = vmatpush.bf16.msra.mxu0 0
        %1026 = vmatpush.bf16.msra.mxu0 %v1011
        %1027 = vmatpush.bf16.msra.mxu0 %v1010
        %1028 = vmatmul.bf16.gmra.mxu0 %v1018
        %v1029 = vpop.f32.mrf.mxu0
        %v1030 = vadd.f32 %v1015, %v1029
        %v1031 = vpop.f32.mrf.mxu0
        %v1032 = vadd.f32 %v1015, %v1031
        %1033 = vdwg.mxu0
        %1036 = vrot.lane.b32.xlu0 %v1030, 16
        %v1037 = vpop.permute.xlu0 %1036
        %1038 = vrot.lane.b32.xlu0 %v1032, 16
        %v1039 = vpop.permute.xlu0 %1038
        %vm1042 = vcmask 195712
        %1043 = vst.msk [vmem:[%s401] sm:$0xff] %vm1042, %v1037
        %1044 = vst.msk [vmem:[%s401 + $0x8] sm:$0xff] %vm1042, %v1039
        %1045 = vrot.lane.b32.xlu0 %v684, 104
        %v1046 = vpop.permute.xlu0 %1045
        %1047 = vrot.lane.b32.xlu0 %v684, 72
        %v1048 = vpop.permute.xlu0 %1047
        %v1050 = vsel %vm687, %v1046, 0
        %v1053 = vsel %vm687, %v1048, 0
        %1055 = vmatpush.bf16.xpose.msra.mxu0 0
        %1056 = vmatpush.bf16.xpose.msra.mxu0 0
        %1057 = vmatpush.bf16.xpose.msra.mxu0 0
        %1058 = vmatpush.bf16.xpose.msra.mxu0 0
        %1059 = vmatpush.bf16.xpose.msra.mxu0 0
        %1060 = vmatpush.bf16.xpose.msra.mxu0 0
        %1061 = vmatpush.bf16.xpose.msra.mxu0 0
        %1062 = vmatpush.bf16.xpose.msra.mxu0 %v1053
        %1063 = vmatmul.bf16.gmra.mxu0 %v1050
        %v1064 = vpop.f32.mrf.mxu0
        %v1065 = vadd.f32 %v578, %v1064
        %v1066 = vpop.f32.mrf.mxu0
        %v1067 = vadd.f32 %v634, %v1066
        %1068 = vdwg.mxu0
        %v1069 = vsel %vm440, %v1065, -inf
        %1070 = vmax.xlane.f32.xlu0 %v1069
        %v1071 = vpop.xlane.xlu0 %1070
        %v1072 = vsel %vm440, %v1067, -inf
        %1073 = vmax.xlane.f32.xlu0 %v1072
        %v1074 = vpop.xlane.xlu0 %1073
        %v1075 = vsub.f32 %v1065, %v1071
        %v1076 = vsub.f32 %v1067, %v1074
        %v1077 = vmul.f32 %v1075, 1.442695
        %v1078 = vpow.pop %v1077
        %v1079 = vmul.f32 %v1076, 1.442695
        %v1080 = vpow.pop %v1079
        %v1081 = vsel %vm440, %v1078, 0.0
        %1082 = vadd.xlane.f32.xlu0 %v1081
        %v1083 = vpop.xlane.xlu0 %1082
        %v1084 = vsel %vm440, %v1080, 0.0
        %1085 = vadd.xlane.f32.xlu0 %v1084
        %v1086 = vpop.xlane.xlu0 %1085
        %v1087 = vrcp.pop %v1083
        %v1088 = vrcp.pop %v1086
        %v1089 = vmul.f32 %v1078, %v1087
        %v1090 = vmul.f32 %v1080, %v1088
        %1093 = vrot.lane.b32.xlu0 %v1089, 48
        %v1094 = vpop.permute.xlu0 %1093
        %1095 = vrot.lane.b32.xlu0 %v1090, 48
        %v1096 = vpop.permute.xlu0 %1095
        %vm1099 = vcmask 523648
        %1100 = vst.msk [vmem:[%s408] sm:$0xff] %vm1099, %v1094
        %1101 = vst.msk [vmem:[%s408 + $0x8] sm:$0xff] %vm1099, %v1096
        %v1102 = vpack.c.bf16 %v1090, %v1089
        %v1104 = vsel %vm440, %v1102, 0
        %1106 = vmatpush.bf16.msra.mxu0 0
        %1107 = vmatpush.bf16.msra.mxu0 0
        %1108 = vmatpush.bf16.msra.mxu0 0
        %1109 = vmatpush.bf16.msra.mxu0 0
        %1110 = vmatpush.bf16.msra.mxu0 0
        %1111 = vmatpush.bf16.msra.mxu0 0
        %1112 = vmatpush.bf16.msra.mxu0 0
        %1113 = vmatpush.bf16.msra.mxu0 %v647
        %1114 = vmatmul.bf16.gmra.mxu0 %v1104
        %v1115 = vpop.f32.mrf.mxu0
        %v1116 = vadd.f32 0.0, %v1115
        %v1117 = vpop.f32.mrf.mxu0
        %v1118 = vadd.f32 0.0, %v1117
        %1119 = vdwg.mxu0
        %v1120 = vpack.c.bf16 %v1118, %v1116
        %s1121 = scalar_lea.vmem %s6, 48
        %v1122 = vld [vmem:[%s1121] sm:$0xf]
        %v1123 = vld [vmem:[%s1121 + $0x4] sm:$0xf]
        %v1124 = vld [vmem:[%s1121 + $0x8] sm:$0xf]
        %v1125 = vld [vmem:[%s1121 + $0xc] sm:$0xf]
        %v1126 = vld [vmem:[%s7] sm:$0x1]
        %v1128 = vperm.slane %v1126, 0
        %v1133 = vunpack.c.l.b16 %v1122
        %v1134 = vunpack.c.l.b16 %v1123
        %v1135 = vunpack.c.l.b16 %v1124
        %v1136 = vunpack.c.l.b16 %v1125
        %v1137 = vpack.c.b16 %v1134, %v1133
        %v1138 = vpack.c.b16 %v1136, %v1135
        %1141 = vrot.lane.b32.xlu0 %v1128, 104
        %v1142 = vpop.permute.xlu0 %1141
        %v1145 = vsel %vm660, %v1120, 0
        %1147 = vmatpush.bf16.msra.mxu0 0
        %1148 = vmatpush.bf16.msra.mxu0 0
        %1149 = vmatpush.bf16.msra.mxu0 0
        %1150 = vmatpush.bf16.msra.mxu0 0
        %1151 = vmatpush.bf16.msra.mxu0 0
        %1152 = vmatpush.bf16.msra.mxu0 0
        %1153 = vmatpush.bf16.msra.mxu0 %v1138
        %1154 = vmatpush.bf16.msra.mxu0 %v1137
        %1155 = vmatmul.bf16.gmra.mxu0 %v1145
        %v1156 = vpop.f32.mrf.mxu0
        %v1157 = vadd.f32 %v1142, %v1156
        %v1158 = vpop.f32.mrf.mxu0
        %v1159 = vadd.f32 %v1142, %v1158
        %1160 = vdwg.mxu0
        %1163 = vrot.lane.b32.xlu0 %v1157, 24
        %v1164 = vpop.permute.xlu0 %1163
        %1165 = vrot.lane.b32.xlu0 %v1159, 24
        %v1166 = vpop.permute.xlu0 %1165
        %vm1169 = vcmask 261312
        %1170 = vst.msk [vmem:[%s401] sm:$0xff] %vm1169, %v1164
        %1171 = vst.msk [vmem:[%s401 + $0x8] sm:$0xff] %vm1169, %v1166
        %s1172 = sand.u32 %s234, 1
        %s1173 = scalar_lea.sflag [#allocation4], %s1172
        %s1174 = sand.u32 %s234, 1
        %s1175 = smul.addr %s1174, 16
        %s1176 = scalar_lea.vmem [#allocation5], %s1175
        %s1177 = sand.u32 %s262, 1
        %s1178 = scalar_lea.sflag [#allocation7], %s1177
        %s1179 = sand.u32 %s262, 1
        %s1180 = smul.addr %s1179, 16
        %s1181 = scalar_lea.vmem [#allocation6], %s1180
        // Predicated region
        $region57: #{tpu_custom_call.1} parent=51 // pred_check
          %p1182 = pneg %p244
        $region58: #{tpu_custom_call.1} parent=51 // pred_check_branch
          %1184 = sbr.rel (%p1182) target = $region60
        $region59: #{tpu_custom_call.1} parent=51 // pred_region
          %1186 = vsyncadd %s1173, 0
          %s1187 = smul.addr %s35, 2
          %s1188 = smul.addr %s34, 8
          %s1189 = sadd.s32 %s1187, %s1188
          %s1190 = smul.addr %s1189, 8
          %s1191 = scalar_lea.hbm %s8, %s1190
          %s1192 = sshll.u32 %s1176, 4
          %s1193 = int_to_ptr.vmem [resolvable:$true] %s1192
          %s1194 = sshll.u32 %s1191, 4
          %s1195 = int_to_ptr.hbm [resolvable:$true] %s1194
          %1200 = dma.vmem_to_hbm [thread:$0]  %s1193, 256, %s1195, %s1173, 128, 128, 8
        $region60: #{tpu_custom_call.1} parent=51 // pred_fallthru
          _
        // Predicated region
        $region61: #{tpu_custom_call.1} parent=51 // pred_check
          %p1201 = pneg %p272
        $region62: #{tpu_custom_call.1} parent=51 // pred_check_branch
          %1203 = sbr.rel (%p1201) target = $region64
        $region63: #{tpu_custom_call.1} parent=51 // pred_region
          %1205 = vsyncadd %s1178, 0
          %s1206 = smul.addr %s35, 2
          %s1207 = smul.addr %s34, 8
          %s1208 = sadd.s32 %s1206, %s1207
          %s1209 = smul.addr %s1208, 8
          %s1210 = scalar_lea.hbm %s9, %s1209
          %s1211 = sshll.u32 %s1181, 4
          %s1212 = int_to_ptr.vmem [resolvable:$true] %s1211
          %s1213 = sshll.u32 %s1210, 4
          %s1214 = int_to_ptr.hbm [resolvable:$true] %s1213
          %1219 = dma.vmem_to_hbm [thread:$0]  %s1212, 256, %s1214, %s1178, 128, 128, 8
        $region64: #{tpu_custom_call.1} parent=51 // pred_fallthru
          _
      $region52: #{tpu_custom_call.1} parent=5 // pred_fallthru
        _
      %p1220 = scmp.le.s32.totalorder 2, %s25
      // Predicated region
      $region65: #{tpu_custom_call.1} parent=5 // pred_check
        %p1221 = pneg %p1220
      $region66: #{tpu_custom_call.1} parent=5 // pred_check_branch
        %1223 = sbr.rel (%p1221) target = $region68
      $region67: #{tpu_custom_call.1} parent=5 // pred_region
        %s1224 = ssub.s32 %s25, 2
        // Predicated region
        $region69: #{tpu_custom_call.1} parent=67 // pred_check
          %p1225 = pneg %p250
        $region70: #{tpu_custom_call.1} parent=67 // pred_check_branch
          %1227 = sbr.rel (%p1225) target = $region72
        $region71: #{tpu_custom_call.1} parent=67 // pred_region
          %s1228 = sand.u32 %s235, 1
          %s1229 = scalar_lea.sflag [#allocation4], %s1228
          %s1230 = sand.u32 %s235, 1
          %s1231 = smul.addr %s1230, 16
          %s1232 = scalar_lea.vmem [#allocation5], %s1231
          %1234 = dma.done %s1229, 256
        $region72: #{tpu_custom_call.1} parent=67 // pred_fallthru
          _
        // Predicated region
        $region73: #{tpu_custom_call.1} parent=67 // pred_check
          %p1235 = pneg %p278
        $region74: #{tpu_custom_call.1} parent=67 // pred_check_branch
          %1237 = sbr.rel (%p1235) target = $region76
        $region75: #{tpu_custom_call.1} parent=67 // pred_region
          %s1238 = sand.u32 %s263, 1
          %s1239 = scalar_lea.sflag [#allocation7], %s1238
          %s1240 = sand.u32 %s263, 1
          %s1241 = smul.addr %s1240, 16
          %s1242 = scalar_lea.vmem [#allocation6], %s1241
          %1244 = dma.done %s1239, 256
        $region76: #{tpu_custom_call.1} parent=67 // pred_fallthru
          _
      $region68: #{tpu_custom_call.1} parent=5 // pred_fallthru
        _
    $region6: #{tpu_custom_call.1} parent=1 // loop_footer
      %s29 = sadd.s32 1, %s25
    $region7: #{tpu_custom_call.1} parent=1 // loop_footer_branch
      %24 = sbr.rel target = $region3
    $region8: #{tpu_custom_call.1} parent=1 // loop_exit
      _
    %1245 = vsyncpa [#allocation3], 1
    %s1246 = scalar_lea.sflag [#allocation3], 1
    %1247 = vsyncpa %s1246, 1
    %1248 = vsyncpa [#allocation4], 1
    %s1249 = scalar_lea.sflag [#allocation4], 1
    %1250 = vsyncpa %s1249, 1
    %1251 = vsyncpa [#allocation7], 1
    %s1252 = scalar_lea.sflag [#allocation7], 1
    %1253 = vsyncpa %s1252, 1

</llo_original>
